<compile_context>
chip_gen: v6e
topology: v6e:2x2x1
jax: 0.10.0
libtpu: 0.0.40
codegen_flags: <defaults>
</compile_context>

<pallas_src>
from math import sqrt

import jax
import jax.numpy as jnp
from jax.experimental import pallas as pl
from jax.experimental.pallas import tpu as pltpu

# ----------------------------- model config ---------------------------------
B = 2          # batch
L = 8          # sequence length
D_MODEL = 32   # d_model
N_HEADS = 4
HEAD_DIM = D_MODEL // N_HEADS
D_HIDDEN = 64  # SwiGLU hidden dim
EPS = 1e-6
SCALE = sqrt(D_MODEL / N_HEADS)
BL = B * L     # fused batch*sequence rows


# ------------------------------- kernel -------------------------------------
def transformer_block_kernel(
    x_ref,        # (BL, D)        f32
    cos_ref,      # (BL, D)        f32  pair-expanded cos, tiled over heads
    sin_ref,      # (BL, D)        f32  pair-expanded signed sin (-s, +s), tiled over heads
    mask_ref,     # (BL, BL)       f32  block-diagonal additive attention mask
    anw_ref,      # (1, D)         f32  attn RMSNorm weight
    wall_ref,     # (D, 5*D)       bf16 [Wq/scale | Wq_swap/scale | Wk | Wk_swap | Wv]
    wo_ref,       # (D, D)         bf16
    fnw_ref,      # (1, D)         f32  ffn RMSNorm weight
    wgu_ref,      # (D, 2*D_HID)   bf16 [W_gate | W_up]
    wd_ref,       # (D_HIDDEN, D)  bf16
    o_ref,        # (BL, D)        f32
):
    f32 = jnp.float32
    bf16 = jnp.bfloat16
    x = x_ref[...]                                   # (BL, D) f32

    def rmsnorm(v, w):
        ms = jnp.mean(v * v, axis=-1, keepdims=True)
        return v * jax.lax.rsqrt(ms + EPS) * w

    # ---- attention branch ----------------------------------------------------
    xn = rmsnorm(x, anw_ref[...])                    # (BL, D) f32

    # single fused projection: q, q_swapped, k, k_swapped, v in one MXU pass
    proj = jnp.dot(xn.astype(bf16), wall_ref[...], preferred_element_type=f32)   # (BL, 5D)
    q  = proj[:, 0 * D_MODEL:1 * D_MODEL]
    qs = proj[:, 1 * D_MODEL:2 * D_MODEL]
    k  = proj[:, 2 * D_MODEL:3 * D_MODEL]
    ks = proj[:, 3 * D_MODEL:4 * D_MODEL]
    v  = proj[:, 4 * D_MODEL:5 * D_MODEL]

    cos = cos_ref[...]
    sin = sin_ref[...]
    # interleaved-pair RoPE on full width; rotated term comes straight from xn @ W_swapped
    qr = (q * cos + qs * sin).astype(bf16)           # (BL, D)
    kr = (k * cos + ks * sin).astype(bf16)
    vb = v.astype(bf16)
    mask = mask_ref[...]

    head_outs = []
    for h in range(N_HEADS):                         # only scores / PV remain per-head
        sl = slice(h * HEAD_DIM, (h + 1) * HEAD_DIM)
        s = jax.lax.dot_general(qr[:, sl], kr[:, sl], (((1,), (1,)), ((), ())),
                                preferred_element_type=f32)        # (BL, BL)
        s = s + mask
        s = s - jnp.max(s, axis=-1, keepdims=True)
        p = jnp.exp(s)
        p = p * pl.reciprocal(jnp.sum(p, axis=-1, keepdims=True), approx=True)
        head_outs.append(jnp.dot(p.astype(bf16), vb[:, sl],
                                 preferred_element_type=f32))      # (BL, Hd)

    attn_cat = jnp.concatenate(head_outs, axis=-1).astype(bf16)    # (BL, D)
    x1 = x + jnp.dot(attn_cat, wo_ref[...], preferred_element_type=f32)   # residual 1

    # ---- FFN branch (RMSNorm -> SwiGLU) ---------------------------------------
    xn2 = rmsnorm(x1, fnw_ref[...])
    gu = jnp.dot(xn2.astype(bf16), wgu_ref[...], preferred_element_type=f32)  # (BL, 128)
    g = gu[:, :D_HIDDEN]
    u = gu[:, D_HIDDEN:]
    hdn = ((g * jax.nn.sigmoid(g)) * u).astype(bf16)               # SiLU(g) * u
    o_ref[...] = x1 + jnp.dot(hdn, wd_ref[...], preferred_element_type=f32)   # residual 2


# ------------------------------- wrapper -------------------------------------
@jax.jit
def transformer_block(x, cos, sin, mask, params):
    """x: (B, L, D) f32; cos/sin: (L, HEAD_DIM//2) f32; mask: (L, L) additive f32."""
    bf16 = jnp.bfloat16

    # --- fused projection weight: [Wq/scale | Wq_swap/scale | Wk | Wk_swap | Wv] ----
    def swap_pairs(w):  # swap adjacent output columns: (..., 2j) <-> (..., 2j+1)
        w2 = w.reshape(w.shape[0], D_MODEL // 2, 2)
        return w2[:, :, ::-1].reshape(w.shape[0], D_MODEL)

    wq = params["wq"] * (1.0 / SCALE)
    wk = params["wk"]
    w_all = jnp.concatenate(
        [wq, swap_pairs(wq), wk, swap_pairs(wk), params["wv"]], axis=1
    ).astype(bf16)                                                   # (D, 5D)
    w_o = params["wo"].astype(bf16)                                  # (D, D)
    w_gu = jnp.concatenate([params["w_gate"], params["w_up"]], axis=1).astype(bf16)  # (D, 128)
    w_d = params["w_down"].astype(bf16)                              # (D_HIDDEN, D)

    # --- RoPE tables: pair-expanded, tiled over heads and fused batch rows --------
    cos_head = jnp.repeat(cos, 2, axis=1)                            # (L, Hd)
    sin_head = jnp.stack([-sin, sin], axis=-1).reshape(L, HEAD_DIM)  # (-s, +s) interleaved
    cos_full = jnp.tile(cos_head, (B, N_HEADS))                      # (BL, D)
    sin_full = jnp.tile(sin_head, (B, N_HEADS))

    # --- block-diagonal additive mask so fused-batch attention stays per-batch ----
    batch_ids = jnp.repeat(jnp.arange(B), L)                         # (BL,)
    same = batch_ids[:, None] == batch_ids[None, :]
    mask_bl = jnp.where(same, jnp.tile(mask, (B, B)), jnp.float32(-1e9))   # (BL, BL)

    x_flat = x.reshape(BL, D_MODEL)

    # single invocation, no grid -> whole operands resident in VMEM, no pipelining.
    vmem_spec = lambda: pl.BlockSpec(memory_space=pltpu.MemorySpace.VMEM)

    out = pl.pallas_call(
        transformer_block_kernel,
        out_shape=jax.ShapeDtypeStruct((BL, D_MODEL), jnp.float32),
        in_specs=[vmem_spec() for _ in range(10)],
        out_specs=vmem_spec(),
    )(
        x_flat, cos_full, sin_full, mask_bl,
        params["attn_norm_w"], w_all, w_o,
        params["ffn_norm_w"], w_gu, w_d,
    )
    return out.reshape(B, L, D_MODEL)


# --------------------------- plain-JAX reference -----------------------------
def reference_block(x, cos, sin, mask, params):
    def rmsnorm(v, w):
        return v * jax.lax.rsqrt(jnp.mean(v * v, -1, keepdims=True) + EPS) * w

    def rope(t):  # t: (B, n, L, Hd), interleaved complex pairs
        tr = t[..., 0::2]
        ti = t[..., 1::2]
        rr = tr * cos - ti * sin
        ri = tr * sin + ti * cos
        return jnp.stack([rr, ri], axis=-1).reshape(t.shape)

    xn = rmsnorm(x, params["attn_norm_w"][0])

    def split_heads(t):  # (B, L, D) -> (B, n, L, Hd)
        return t.reshape(B, L, N_HEADS, HEAD_DIM).transpose(0, 2, 1, 3)

    q = split_heads(xn @ params["wq"])
    k = split_heads(xn @ params["wk"])
    v = split_heads(xn @ params["wv"])
    q, k = rope(q), rope(k)
    attn = q @ k.transpose(0, 1, 3, 2) / SCALE + mask[None, None]
    attn = jax.nn.softmax(attn, axis=-1)
    o = (attn @ v).transpose(0, 2, 1, 3).reshape(B, L, D_MODEL) @ params["wo"]
    x1 = x + o

    xn2 = rmsnorm(x1, params["ffn_norm_w"][0])
    g = xn2 @ params["w_gate"]
    u = xn2 @ params["w_up"]
    return x1 + (jax.nn.silu(g) * u) @ params["w_down"]


# --------------------------------- main --------------------------------------
if __name__ == "__main__":
    key = jax.random.PRNGKey(0)
    ks = jax.random.split(key, 12)

    x = jax.random.normal(ks[0], (B, L, D_MODEL), jnp.float32)

    # RoPE frequencies: freqs[l, j] = exp(i * l * theta_j)  -> cos/sin tables
    inv_freq = 1.0 / (10000.0 ** (jnp.arange(0, HEAD_DIM, 2, dtype=jnp.float32) / HEAD_DIM))
    angles = jnp.arange(L, dtype=jnp.float32)[:, None] * inv_freq[None, :]   # (L, Hd/2)
    cos, sin = jnp.cos(angles), jnp.sin(angles)

    # causal additive mask
    causal = jnp.tril(jnp.ones((L, L), jnp.bool_))
    mask = jnp.where(causal, 0.0, -1e9).astype(jnp.float32)

    s = 0.1
    params = {
        "attn_norm_w": (1.0 + s * jax.random.normal(ks[1], (1, D_MODEL))).astype(jnp.float32),
        "wq": s * jax.random.normal(ks[2], (D_MODEL, D_MODEL), jnp.float32),
        "wk": s * jax.random.normal(ks[3], (D_MODEL, D_MODEL), jnp.float32),
        "wv": s * jax.random.normal(ks[4], (D_MODEL, D_MODEL), jnp.float32),
        "wo": s * jax.random.normal(ks[5], (D_MODEL, D_MODEL), jnp.float32),
        "ffn_norm_w": (1.0 + s * jax.random.normal(ks[6], (1, D_MODEL))).astype(jnp.float32),
        "w_gate": s * jax.random.normal(ks[7], (D_MODEL, D_HIDDEN), jnp.float32),
        "w_up": s * jax.random.normal(ks[8], (D_MODEL, D_HIDDEN), jnp.float32),
        "w_down": s * jax.random.normal(ks[9], (D_HIDDEN, D_MODEL), jnp.float32),
    }

    out = transformer_block(x, cos, sin, mask, params)
    out = jax.block_until_ready(out)

    ref = jax.block_until_ready(reference_block(x, cos, sin, mask, params))
    assert out.shape == (B, L, D_MODEL)
    assert jnp.allclose(out, ref, rtol=1e-2, atol=1e-2), float(jnp.max(jnp.abs(out - ref)))

    print("KERNEL_OK")
</pallas_src>

<mosaic_0001>
module attributes {stable_mosaic.version = 11 : i64} {
  func.func @transformer_block_kernel(%arg0: memref<16x32xf32, #tpu.memory_space<vmem>>, %arg1: memref<16x32xf32, #tpu.memory_space<vmem>>, %arg2: memref<16x32xf32, #tpu.memory_space<vmem>>, %arg3: memref<16x16xf32, #tpu.memory_space<vmem>>, %arg4: memref<1x32xf32, #tpu.memory_space<vmem>>, %arg5: memref<32x160xbf16, #tpu.memory_space<vmem>>, %arg6: memref<32x32xbf16, #tpu.memory_space<vmem>>, %arg7: memref<1x32xf32, #tpu.memory_space<vmem>>, %arg8: memref<32x128xbf16, #tpu.memory_space<vmem>>, %arg9: memref<64x32xbf16, #tpu.memory_space<vmem>>, %arg10: memref<16x32xf32, #tpu.memory_space<vmem>>) attributes {dimension_semantics = [], scalar_prefetch = 0 : i64, scratch_operands = 0 : i64, tpu.core_type = #tpu.core_type<tc>} {
    %c0 = arith.constant 0 : index
    %c0_0 = arith.constant 0 : index
    %0 = vector.load %arg0[%c0, %c0_0] : memref<16x32xf32, #tpu.memory_space<vmem>>, vector<16x32xf32>
    %c0_1 = arith.constant 0 : index
    %c0_2 = arith.constant 0 : index
    %1 = vector.load %arg4[%c0_1, %c0_2] : memref<1x32xf32, #tpu.memory_space<vmem>>, vector<1x32xf32>
    %2 = arith.mulf %0, %0 : vector<16x32xf32>
    %cst = arith.constant dense<0.000000e+00> : vector<16xf32>
    %3 = vector.multi_reduction <add>, %2, %cst [1] : vector<16x32xf32> to vector<16xf32>
    %4 = vector.shape_cast %3 : vector<16xf32> to vector<16x1xf32>
    %cst_3 = arith.constant 3.200000e+01 : f32
    %5 = vector.broadcast %cst_3 : f32 to vector<16x1xf32>
    %6 = arith.divf %4, %5 : vector<16x1xf32>
    %cst_4 = arith.constant 9.99999997E-7 : f32
    %7 = vector.broadcast %cst_4 : f32 to vector<16x1xf32>
    %8 = arith.addf %6, %7 : vector<16x1xf32>
    %9 = math.rsqrt %8 : vector<16x1xf32>
    %10 = vector.broadcast %9 : vector<16x1xf32> to vector<16x32xf32>
    %11 = arith.mulf %0, %10 : vector<16x32xf32>
    %12 = vector.broadcast %1 : vector<1x32xf32> to vector<16x32xf32>
    %13 = arith.mulf %11, %12 : vector<16x32xf32>
    %14 = arith.truncf %13 : vector<16x32xf32> to vector<16x32xbf16>
    %c0_5 = arith.constant 0 : index
    %c0_6 = arith.constant 0 : index
    %15 = vector.load %arg5[%c0_5, %c0_6] : memref<32x160xbf16, #tpu.memory_space<vmem>>, vector<32x160xbf16>
    %cst_7 = arith.constant dense<0.000000e+00> : vector<16x160xf32>
    %16 = tpu.matmul %14, %15, %cst_7 {dimension_numbers = #tpu.dot_dimension_numbers<[1], [0], [0], [1], [0, 0, 1, 1], [], []>} : vector<16x32xbf16>, vector<32x160xbf16>, vector<16x160xf32> -> vector<16x160xf32>
    %17 = vector.extract_strided_slice %16 {offsets = [0, 0], sizes = [16, 32], strides = [1, 1]} : vector<16x160xf32> to vector<16x32xf32>
    %18 = vector.extract_strided_slice %16 {offsets = [0, 32], sizes = [16, 32], strides = [1, 1]} : vector<16x160xf32> to vector<16x32xf32>
    %19 = vector.extract_strided_slice %16 {offsets = [0, 64], sizes = [16, 32], strides = [1, 1]} : vector<16x160xf32> to vector<16x32xf32>
    %20 = vector.extract_strided_slice %16 {offsets = [0, 96], sizes = [16, 32], strides = [1, 1]} : vector<16x160xf32> to vector<16x32xf32>
    %21 = vector.extract_strided_slice %16 {offsets = [0, 128], sizes = [16, 32], strides = [1, 1]} : vector<16x160xf32> to vector<16x32xf32>
    %c0_8 = arith.constant 0 : index
    %c0_9 = arith.constant 0 : index
    %22 = vector.load %arg1[%c0_8, %c0_9] : memref<16x32xf32, #tpu.memory_space<vmem>>, vector<16x32xf32>
    %c0_10 = arith.constant 0 : index
    %c0_11 = arith.constant 0 : index
    %23 = vector.load %arg2[%c0_10, %c0_11] : memref<16x32xf32, #tpu.memory_space<vmem>>, vector<16x32xf32>
    %24 = arith.mulf %17, %22 : vector<16x32xf32>
    %25 = arith.mulf %18, %23 : vector<16x32xf32>
    %26 = arith.addf %24, %25 : vector<16x32xf32>
    %27 = arith.truncf %26 : vector<16x32xf32> to vector<16x32xbf16>
    %28 = arith.mulf %19, %22 : vector<16x32xf32>
    %29 = arith.mulf %20, %23 : vector<16x32xf32>
    %30 = arith.addf %28, %29 : vector<16x32xf32>
    %31 = arith.truncf %30 : vector<16x32xf32> to vector<16x32xbf16>
    %32 = arith.truncf %21 : vector<16x32xf32> to vector<16x32xbf16>
    %c0_12 = arith.constant 0 : index
    %c0_13 = arith.constant 0 : index
    %33 = vector.load %arg3[%c0_12, %c0_13] : memref<16x16xf32, #tpu.memory_space<vmem>>, vector<16x16xf32>
    %34 = vector.extract_strided_slice %27 {offsets = [0, 0], sizes = [16, 8], strides = [1, 1]} : vector<16x32xbf16> to vector<16x8xbf16>
    %35 = vector.extract_strided_slice %31 {offsets = [0, 0], sizes = [16, 8], strides = [1, 1]} : vector<16x32xbf16> to vector<16x8xbf16>
    %cst_14 = arith.constant dense<0.000000e+00> : vector<16x16xf32>
    %36 = tpu.matmul %34, %35, %cst_14 {dimension_numbers = #tpu.dot_dimension_numbers<[1], [1], [0], [0], [0, 0, 1, 0], [], []>} : vector<16x8xbf16>, vector<16x8xbf16>, vector<16x16xf32> -> vector<16x16xf32>
    %37 = arith.addf %36, %33 : vector<16x16xf32>
    %cst_15 = arith.constant dense<0xFF800000> : vector<16xf32>
    %38 = vector.multi_reduction <maximumf>, %37, %cst_15 [1] : vector<16x16xf32> to vector<16xf32>
    %39 = vector.shape_cast %38 : vector<16xf32> to vector<16x1xf32>
    %40 = vector.broadcast %39 : vector<16x1xf32> to vector<16x16xf32>
    %41 = arith.subf %37, %40 : vector<16x16xf32>
    %42 = math.exp %41 : vector<16x16xf32>
    %cst_16 = arith.constant dense<0.000000e+00> : vector<16xf32>
    %43 = vector.multi_reduction <add>, %42, %cst_16 [1] : vector<16x16xf32> to vector<16xf32>
    %44 = vector.shape_cast %43 : vector<16xf32> to vector<16x1xf32>
    %45 = tpu.reciprocal %44 {approx = true} : vector<16x1xf32> -> vector<16x1xf32>
    %46 = vector.broadcast %45 : vector<16x1xf32> to vector<16x16xf32>
    %47 = arith.mulf %42, %46 : vector<16x16xf32>
    %48 = arith.truncf %47 : vector<16x16xf32> to vector<16x16xbf16>
    %49 = vector.extract_strided_slice %32 {offsets = [0, 0], sizes = [16, 8], strides = [1, 1]} : vector<16x32xbf16> to vector<16x8xbf16>
    %cst_17 = arith.constant dense<0.000000e+00> : vector<16x8xf32>
    %50 = tpu.matmul %48, %49, %cst_17 {dimension_numbers = #tpu.dot_dimension_numbers<[1], [0], [0], [1], [0, 0, 1, 1], [], []>} : vector<16x16xbf16>, vector<16x8xbf16>, vector<16x8xf32> -> vector<16x8xf32>
    %51 = vector.extract_strided_slice %27 {offsets = [0, 8], sizes = [16, 8], strides = [1, 1]} : vector<16x32xbf16> to vector<16x8xbf16>
    %52 = vector.extract_strided_slice %31 {offsets = [0, 8], sizes = [16, 8], strides = [1, 1]} : vector<16x32xbf16> to vector<16x8xbf16>
    %cst_18 = arith.constant dense<0.000000e+00> : vector<16x16xf32>
    %53 = tpu.matmul %51, %52, %cst_18 {dimension_numbers = #tpu.dot_dimension_numbers<[1], [1], [0], [0], [0, 0, 1, 0], [], []>} : vector<16x8xbf16>, vector<16x8xbf16>, vector<16x16xf32> -> vector<16x16xf32>
    %54 = arith.addf %53, %33 : vector<16x16xf32>
    %cst_19 = arith.constant dense<0xFF800000> : vector<16xf32>
    %55 = vector.multi_reduction <maximumf>, %54, %cst_19 [1] : vector<16x16xf32> to vector<16xf32>
    %56 = vector.shape_cast %55 : vector<16xf32> to vector<16x1xf32>
    %57 = vector.broadcast %56 : vector<16x1xf32> to vector<16x16xf32>
    %58 = arith.subf %54, %57 : vector<16x16xf32>
    %59 = math.exp %58 : vector<16x16xf32>
    %cst_20 = arith.constant dense<0.000000e+00> : vector<16xf32>
    %60 = vector.multi_reduction <add>, %59, %cst_20 [1] : vector<16x16xf32> to vector<16xf32>
    %61 = vector.shape_cast %60 : vector<16xf32> to vector<16x1xf32>
    %62 = tpu.reciprocal %61 {approx = true} : vector<16x1xf32> -> vector<16x1xf32>
    %63 = vector.broadcast %62 : vector<16x1xf32> to vector<16x16xf32>
    %64 = arith.mulf %59, %63 : vector<16x16xf32>
    %65 = arith.truncf %64 : vector<16x16xf32> to vector<16x16xbf16>
    %66 = vector.extract_strided_slice %32 {offsets = [0, 8], sizes = [16, 8], strides = [1, 1]} : vector<16x32xbf16> to vector<16x8xbf16>
    %cst_21 = arith.constant dense<0.000000e+00> : vector<16x8xf32>
    %67 = tpu.matmul %65, %66, %cst_21 {dimension_numbers = #tpu.dot_dimension_numbers<[1], [0], [0], [1], [0, 0, 1, 1], [], []>} : vector<16x16xbf16>, vector<16x8xbf16>, vector<16x8xf32> -> vector<16x8xf32>
    %68 = vector.extract_strided_slice %27 {offsets = [0, 16], sizes = [16, 8], strides = [1, 1]} : vector<16x32xbf16> to vector<16x8xbf16>
    %69 = vector.extract_strided_slice %31 {offsets = [0, 16], sizes = [16, 8], strides = [1, 1]} : vector<16x32xbf16> to vector<16x8xbf16>
    %cst_22 = arith.constant dense<0.000000e+00> : vector<16x16xf32>
    %70 = tpu.matmul %68, %69, %cst_22 {dimension_numbers = #tpu.dot_dimension_numbers<[1], [1], [0], [0], [0, 0, 1, 0], [], []>} : vector<16x8xbf16>, vector<16x8xbf16>, vector<16x16xf32> -> vector<16x16xf32>
    %71 = arith.addf %70, %33 : vector<16x16xf32>
    %cst_23 = arith.constant dense<0xFF800000> : vector<16xf32>
    %72 = vector.multi_reduction <maximumf>, %71, %cst_23 [1] : vector<16x16xf32> to vector<16xf32>
    %73 = vector.shape_cast %72 : vector<16xf32> to vector<16x1xf32>
    %74 = vector.broadcast %73 : vector<16x1xf32> to vector<16x16xf32>
    %75 = arith.subf %71, %74 : vector<16x16xf32>
    %76 = math.exp %75 : vector<16x16xf32>
    %cst_24 = arith.constant dense<0.000000e+00> : vector<16xf32>
    %77 = vector.multi_reduction <add>, %76, %cst_24 [1] : vector<16x16xf32> to vector<16xf32>
    %78 = vector.shape_cast %77 : vector<16xf32> to vector<16x1xf32>
    %79 = tpu.reciprocal %78 {approx = true} : vector<16x1xf32> -> vector<16x1xf32>
    %80 = vector.broadcast %79 : vector<16x1xf32> to vector<16x16xf32>
    %81 = arith.mulf %76, %80 : vector<16x16xf32>
    %82 = arith.truncf %81 : vector<16x16xf32> to vector<16x16xbf16>
    %83 = vector.extract_strided_slice %32 {offsets = [0, 16], sizes = [16, 8], strides = [1, 1]} : vector<16x32xbf16> to vector<16x8xbf16>
    %cst_25 = arith.constant dense<0.000000e+00> : vector<16x8xf32>
    %84 = tpu.matmul %82, %83, %cst_25 {dimension_numbers = #tpu.dot_dimension_numbers<[1], [0], [0], [1], [0, 0, 1, 1], [], []>} : vector<16x16xbf16>, vector<16x8xbf16>, vector<16x8xf32> -> vector<16x8xf32>
    %85 = vector.extract_strided_slice %27 {offsets = [0, 24], sizes = [16, 8], strides = [1, 1]} : vector<16x32xbf16> to vector<16x8xbf16>
    %86 = vector.extract_strided_slice %31 {offsets = [0, 24], sizes = [16, 8], strides = [1, 1]} : vector<16x32xbf16> to vector<16x8xbf16>
    %cst_26 = arith.constant dense<0.000000e+00> : vector<16x16xf32>
    %87 = tpu.matmul %85, %86, %cst_26 {dimension_numbers = #tpu.dot_dimension_numbers<[1], [1], [0], [0], [0, 0, 1, 0], [], []>} : vector<16x8xbf16>, vector<16x8xbf16>, vector<16x16xf32> -> vector<16x16xf32>
    %88 = arith.addf %87, %33 : vector<16x16xf32>
    %cst_27 = arith.constant dense<0xFF800000> : vector<16xf32>
    %89 = vector.multi_reduction <maximumf>, %88, %cst_27 [1] : vector<16x16xf32> to vector<16xf32>
    %90 = vector.shape_cast %89 : vector<16xf32> to vector<16x1xf32>
    %91 = vector.broadcast %90 : vector<16x1xf32> to vector<16x16xf32>
    %92 = arith.subf %88, %91 : vector<16x16xf32>
    %93 = math.exp %92 : vector<16x16xf32>
    %cst_28 = arith.constant dense<0.000000e+00> : vector<16xf32>
    %94 = vector.multi_reduction <add>, %93, %cst_28 [1] : vector<16x16xf32> to vector<16xf32>
    %95 = vector.shape_cast %94 : vector<16xf32> to vector<16x1xf32>
    %96 = tpu.reciprocal %95 {approx = true} : vector<16x1xf32> -> vector<16x1xf32>
    %97 = vector.broadcast %96 : vector<16x1xf32> to vector<16x16xf32>
    %98 = arith.mulf %93, %97 : vector<16x16xf32>
    %99 = arith.truncf %98 : vector<16x16xf32> to vector<16x16xbf16>
    %100 = vector.extract_strided_slice %32 {offsets = [0, 24], sizes = [16, 8], strides = [1, 1]} : vector<16x32xbf16> to vector<16x8xbf16>
    %cst_29 = arith.constant dense<0.000000e+00> : vector<16x8xf32>
    %101 = tpu.matmul %99, %100, %cst_29 {dimension_numbers = #tpu.dot_dimension_numbers<[1], [0], [0], [1], [0, 0, 1, 1], [], []>} : vector<16x16xbf16>, vector<16x8xbf16>, vector<16x8xf32> -> vector<16x8xf32>
    %102 = tpu.concatenate %50, %67, %84, %101 in 1 : vector<16x8xf32>, vector<16x8xf32>, vector<16x8xf32>, vector<16x8xf32> -> vector<16x32xf32>
    %103 = arith.truncf %102 : vector<16x32xf32> to vector<16x32xbf16>
    %c0_30 = arith.constant 0 : index
    %c0_31 = arith.constant 0 : index
    %104 = vector.load %arg6[%c0_30, %c0_31] : memref<32x32xbf16, #tpu.memory_space<vmem>>, vector<32x32xbf16>
    %cst_32 = arith.constant dense<0.000000e+00> : vector<16x32xf32>
    %105 = tpu.matmul %103, %104, %cst_32 {dimension_numbers = #tpu.dot_dimension_numbers<[1], [0], [0], [1], [0, 0, 1, 1], [], []>} : vector<16x32xbf16>, vector<32x32xbf16>, vector<16x32xf32> -> vector<16x32xf32>
    %106 = arith.addf %0, %105 : vector<16x32xf32>
    %c0_33 = arith.constant 0 : index
    %c0_34 = arith.constant 0 : index
    %107 = vector.load %arg7[%c0_33, %c0_34] : memref<1x32xf32, #tpu.memory_space<vmem>>, vector<1x32xf32>
    %108 = arith.mulf %106, %106 : vector<16x32xf32>
    %cst_35 = arith.constant dense<0.000000e+00> : vector<16xf32>
    %109 = vector.multi_reduction <add>, %108, %cst_35 [1] : vector<16x32xf32> to vector<16xf32>
    %110 = vector.shape_cast %109 : vector<16xf32> to vector<16x1xf32>
    %cst_36 = arith.constant 3.200000e+01 : f32
    %111 = vector.broadcast %cst_36 : f32 to vector<16x1xf32>
    %112 = arith.divf %110, %111 : vector<16x1xf32>
    %cst_37 = arith.constant 9.99999997E-7 : f32
    %113 = vector.broadcast %cst_37 : f32 to vector<16x1xf32>
    %114 = arith.addf %112, %113 : vector<16x1xf32>
    %115 = math.rsqrt %114 : vector<16x1xf32>
    %116 = vector.broadcast %115 : vector<16x1xf32> to vector<16x32xf32>
    %117 = arith.mulf %106, %116 : vector<16x32xf32>
    %118 = vector.broadcast %107 : vector<1x32xf32> to vector<16x32xf32>
    %119 = arith.mulf %117, %118 : vector<16x32xf32>
    %120 = arith.truncf %119 : vector<16x32xf32> to vector<16x32xbf16>
    %c0_38 = arith.constant 0 : index
    %c0_39 = arith.constant 0 : index
    %121 = vector.load %arg8[%c0_38, %c0_39] : memref<32x128xbf16, #tpu.memory_space<vmem>>, vector<32x128xbf16>
    %cst_40 = arith.constant dense<0.000000e+00> : vector<16x128xf32>
    %122 = tpu.matmul %120, %121, %cst_40 {dimension_numbers = #tpu.dot_dimension_numbers<[1], [0], [0], [1], [0, 0, 1, 1], [], []>} : vector<16x32xbf16>, vector<32x128xbf16>, vector<16x128xf32> -> vector<16x128xf32>
    %123 = vector.extract_strided_slice %122 {offsets = [0, 0], sizes = [16, 64], strides = [1, 1]} : vector<16x128xf32> to vector<16x64xf32>
    %124 = vector.extract_strided_slice %122 {offsets = [0, 64], sizes = [16, 64], strides = [1, 1]} : vector<16x128xf32> to vector<16x64xf32>
    %125 = arith.negf %123 : vector<16x64xf32>
    %126 = math.exp %125 : vector<16x64xf32>
    %cst_41 = arith.constant 1.000000e+00 : f32
    %127 = vector.broadcast %cst_41 : f32 to vector<16x64xf32>
    %128 = arith.addf %127, %126 : vector<16x64xf32>
    %129 = arith.divf %127, %128 : vector<16x64xf32>
    %130 = arith.mulf %123, %129 : vector<16x64xf32>
    %131 = arith.mulf %130, %124 : vector<16x64xf32>
    %132 = arith.truncf %131 : vector<16x64xf32> to vector<16x64xbf16>
    %c0_42 = arith.constant 0 : index
    %c0_43 = arith.constant 0 : index
    %133 = vector.load %arg9[%c0_42, %c0_43] : memref<64x32xbf16, #tpu.memory_space<vmem>>, vector<64x32xbf16>
    %cst_44 = arith.constant dense<0.000000e+00> : vector<16x32xf32>
    %134 = tpu.matmul %132, %133, %cst_44 {dimension_numbers = #tpu.dot_dimension_numbers<[1], [0], [0], [1], [0, 0, 1, 1], [], []>} : vector<16x64xbf16>, vector<64x32xbf16>, vector<16x32xf32> -> vector<16x32xf32>
    %135 = arith.addf %106, %134 : vector<16x32xf32>
    %c0_45 = arith.constant 0 : index
    %c0_46 = arith.constant 0 : index
    %136 = vector.load %arg10[%c0_45, %c0_46] : memref<16x32xf32, #tpu.memory_space<vmem>>, vector<16x32xf32>
    tpu.vector_store %arg10[%c0_45, %c0_46], %135 {strides = array<i32>} : memref<16x32xf32, #tpu.memory_space<vmem>>, vector<16x32xf32>,
    return
  }
}

</mosaic_0001>

<llo_original>
// kernel: tile.19
$region0: #{tile.19}
  #allocation0 [shape = 's32[1]{0}', space=sflag, size = 0x4, scoped, tag = 'scoped memory for tile.19']
  %s0 = inlined_call_operand.vmem [shape: f32[8,8], index: 0, kind: input, shape index: {}]
  %s1 = inlined_call_operand.vmem [shape: f32[2,8,4,8], index: 1, kind: output, shape index: {}]
  // Predicated region
  $region2: #{tile.19} parent=0 // pred_check
    _
  $region3: #{tile.19} parent=0 // pred_check_branch
    %3 = sbr.rel (0) target = $region5
  $region4: #{tile.19} parent=0 // pred_region
    _
  $region5: #{tile.19} parent=0 // pred_fallthru
    _
  %v4 = vld [vmem:[%s0] ss:$0 sm:$0xff]
  %5 = vst [vmem:[%s1] sm:$0xf] %v4
  %s6 = scalar_lea.vmem %s1, 32
  %7 = vst [vmem:[%s6] sm:$0xf] %v4
  %s8 = scalar_lea.vmem %s0, 1
  %v9 = vld [vmem:[%s8] ss:$0 sm:$0xff]
  %s10 = scalar_lea.vmem %s1, 4
  %11 = vst [vmem:[%s10] sm:$0xf] %v9
  %s12 = scalar_lea.vmem %s1, 36
  %13 = vst [vmem:[%s12] sm:$0xf] %v9
  %s14 = scalar_lea.vmem %s0, 2
  %v15 = vld [vmem:[%s14] ss:$0 sm:$0xff]
  %s16 = scalar_lea.vmem %s1, 8
  %17 = vst [vmem:[%s16] sm:$0xf] %v15
  %s18 = scalar_lea.vmem %s1, 40
  %19 = vst [vmem:[%s18] sm:$0xf] %v15
  %s20 = scalar_lea.vmem %s0, 3
  %v21 = vld [vmem:[%s20] ss:$0 sm:$0xff]
  %s22 = scalar_lea.vmem %s1, 12
  %23 = vst [vmem:[%s22] sm:$0xf] %v21
  %s24 = scalar_lea.vmem %s1, 44
  %25 = vst [vmem:[%s24] sm:$0xf] %v21
  %s26 = scalar_lea.vmem %s0, 4
  %v27 = vld [vmem:[%s26] ss:$0 sm:$0xff]
  %s28 = scalar_lea.vmem %s1, 16
  %29 = vst [vmem:[%s28] sm:$0xf] %v27
  %s30 = scalar_lea.vmem %s1, 48
  %31 = vst [vmem:[%s30] sm:$0xf] %v27
  %s32 = scalar_lea.vmem %s0, 5
  %v33 = vld [vmem:[%s32] ss:$0 sm:$0xff]
  %s34 = scalar_lea.vmem %s1, 20
  %35 = vst [vmem:[%s34] sm:$0xf] %v33
  %s36 = scalar_lea.vmem %s1, 52
  %37 = vst [vmem:[%s36] sm:$0xf] %v33
  %s38 = scalar_lea.vmem %s0, 6
  %v39 = vld [vmem:[%s38] ss:$0 sm:$0xff]
  %s40 = scalar_lea.vmem %s1, 24
  %41 = vst [vmem:[%s40] sm:$0xf] %v39
  %s42 = scalar_lea.vmem %s1, 56
  %43 = vst [vmem:[%s42] sm:$0xf] %v39
  %s44 = scalar_lea.vmem %s0, 7
  %v45 = vld [vmem:[%s44] ss:$0 sm:$0xff]
  %s46 = scalar_lea.vmem %s1, 28
  %47 = vst [vmem:[%s46] sm:$0xf] %v45
  %s48 = scalar_lea.vmem %s1, 60
  %49 = vst [vmem:[%s48] sm:$0xf] %v45

// kernel: tile.20
$region0: #{tile.20}
  %s0 = inlined_call_operand.vmem [shape: f32[2,8,4,8], index: 0, kind: input, shape index: {}]
  %s1 = inlined_call_operand.vmem [shape: f32[16,32], index: 1, kind: output, shape index: {}]
  $region1: #{tile.20} parent=0
    #allocation0 [shape = 'u8[65536]{0}', space=vmem, size = 0x10000, scoped, tag = 'scoped mem for input reshape']
    %s3 = sshll.u32 1, 4
    %s4 = ssub.s32 %s3, 1
    %s5 = smul.addr 4, 15
    %s6 = scalar_lea.vmem %s0, %s5
    %v7 = vld [vmem:[%s6] sm:%s4]
    %s8 = scalar_lea.vmem [#allocation0], 120
    %9 = vst [vmem:[%s8] sm:%s4] %v7
    %s10 = smul.addr 4, 14
    %s11 = scalar_lea.vmem %s0, %s10
    %v12 = vld [vmem:[%s11] sm:%s4]
    %s13 = scalar_lea.vmem [#allocation0], 112
    %14 = vst [vmem:[%s13] sm:%s4] %v12
    %s15 = smul.addr 4, 13
    %s16 = scalar_lea.vmem %s0, %s15
    %v17 = vld [vmem:[%s16] sm:%s4]
    %s18 = scalar_lea.vmem [#allocation0], 104
    %19 = vst [vmem:[%s18] sm:%s4] %v17
    %s20 = smul.addr 4, 12
    %s21 = scalar_lea.vmem %s0, %s20
    %v22 = vld [vmem:[%s21] sm:%s4]
    %s23 = scalar_lea.vmem [#allocation0], 96
    %24 = vst [vmem:[%s23] sm:%s4] %v22
    %s25 = smul.addr 4, 11
    %s26 = scalar_lea.vmem %s0, %s25
    %v27 = vld [vmem:[%s26] sm:%s4]
    %s28 = scalar_lea.vmem [#allocation0], 88
    %29 = vst [vmem:[%s28] sm:%s4] %v27
    %s30 = smul.addr 4, 10
    %s31 = scalar_lea.vmem %s0, %s30
    %v32 = vld [vmem:[%s31] sm:%s4]
    %s33 = scalar_lea.vmem [#allocation0], 80
    %34 = vst [vmem:[%s33] sm:%s4] %v32
    %s35 = smul.addr 4, 9
    %s36 = scalar_lea.vmem %s0, %s35
    %v37 = vld [vmem:[%s36] sm:%s4]
    %s38 = scalar_lea.vmem [#allocation0], 72
    %39 = vst [vmem:[%s38] sm:%s4] %v37
    %s40 = smul.addr 4, 8
    %s41 = scalar_lea.vmem %s0, %s40
    %v42 = vld [vmem:[%s41] sm:%s4]
    %s43 = scalar_lea.vmem [#allocation0], 64
    %44 = vst [vmem:[%s43] sm:%s4] %v42
    %s45 = smul.addr 4, 7
    %s46 = scalar_lea.vmem %s0, %s45
    %v47 = vld [vmem:[%s46] sm:%s4]
    %s48 = scalar_lea.vmem [#allocation0], 56
    %49 = vst [vmem:[%s48] sm:%s4] %v47
    %s50 = smul.addr 4, 6
    %s51 = scalar_lea.vmem %s0, %s50
    %v52 = vld [vmem:[%s51] sm:%s4]
    %s53 = scalar_lea.vmem [#allocation0], 48
    %54 = vst [vmem:[%s53] sm:%s4] %v52
    %s55 = smul.addr 4, 5
    %s56 = scalar_lea.vmem %s0, %s55
    %v57 = vld [vmem:[%s56] sm:%s4]
    %s58 = scalar_lea.vmem [#allocation0], 40
    %59 = vst [vmem:[%s58] sm:%s4] %v57
    %s60 = smul.addr 4, 4
    %s61 = scalar_lea.vmem %s0, %s60
    %v62 = vld [vmem:[%s61] sm:%s4]
    %s63 = scalar_lea.vmem [#allocation0], 32
    %64 = vst [vmem:[%s63] sm:%s4] %v62
    %s65 = smul.addr 4, 3
    %s66 = scalar_lea.vmem %s0, %s65
    %v67 = vld [vmem:[%s66] sm:%s4]
    %s68 = scalar_lea.vmem [#allocation0], 24
    %69 = vst [vmem:[%s68] sm:%s4] %v67
    %s70 = smul.addr 4, 2
    %s71 = scalar_lea.vmem %s0, %s70
    %v72 = vld [vmem:[%s71] sm:%s4]
    %s73 = scalar_lea.vmem [#allocation0], 16
    %74 = vst [vmem:[%s73] sm:%s4] %v72
    %s75 = scalar_lea.vmem %s0, 4
    %v76 = vld [vmem:[%s75] sm:%s4]
    %s77 = scalar_lea.vmem [#allocation0], 8
    %78 = vst [vmem:[%s77] sm:%s4] %v76
    %v79 = vld [vmem:[%s0] sm:%s4]
    %80 = vst [vmem:[#allocation0] sm:%s4] %v79
    %v81 = vld [vmem:[#allocation0] ss:$8 sm:$0xf]
    %v82 = vld [vmem:[#allocation0] ss:$8 sm:$0xf0]
    %vm83 = vcmask 1047556
    %v84 = vsel %vm83, %v82, %v81
    %vm85 = vcmask 64512
    %86 = vst.msk [vmem:[%s1] sm:$0xff] %vm85, %v84
    %s87 = scalar_lea.vmem [#allocation0], 64
    %v88 = vld [vmem:[%s87] ss:$8 sm:$0xf]
    %s89 = scalar_lea.vmem [#allocation0], 64
    %v90 = vld [vmem:[%s89] ss:$8 sm:$0xf0]
    %vm91 = vcmask 1047556
    %v92 = vsel %vm91, %v90, %v88
    %vm93 = vcmask 64512
    %s94 = scalar_lea.vmem %s1, 8
    %95 = vst.msk [vmem:[%s94] sm:$0xff] %vm93, %v92
    %s96 = scalar_lea.vmem [#allocation0], 3
    %v97 = vld [vmem:[%s96] ss:$8 sm:$0xf]
    %s98 = scalar_lea.vmem [#allocation0], 3
    %v99 = vld [vmem:[%s98] ss:$8 sm:$0xf0]
    %vm100 = vcmask 1047556
    %v101 = vsel %vm100, %v99, %v97
    %102 = vrot.lane.b32.xlu0 %v101, 24
    %v103 = vpop.permute.xlu0 %102
    %vm104 = vcmask 261312
    %105 = vst.msk [vmem:[%s1] sm:$0xff] %vm104, %v103
    %s106 = scalar_lea.vmem [#allocation0], 67
    %v107 = vld [vmem:[%s106] ss:$8 sm:$0xf]
    %s108 = scalar_lea.vmem [#allocation0], 67
    %v109 = vld [vmem:[%s108] ss:$8 sm:$0xf0]
    %vm110 = vcmask 1047556
    %v111 = vsel %vm110, %v109, %v107
    %112 = vrot.lane.b32.xlu0 %v111, 24
    %v113 = vpop.permute.xlu0 %112
    %vm114 = vcmask 261312
    %s115 = scalar_lea.vmem %s1, 8
    %116 = vst.msk [vmem:[%s115] sm:$0xff] %vm114, %v113
    %s117 = scalar_lea.vmem [#allocation0], 2
    %v118 = vld [vmem:[%s117] ss:$8 sm:$0xf]
    %s119 = scalar_lea.vmem [#allocation0], 2
    %v120 = vld [vmem:[%s119] ss:$8 sm:$0xf0]
    %vm121 = vcmask 1047556
    %v122 = vsel %vm121, %v120, %v118
    %123 = vrot.lane.b32.xlu0 %v122, 16
    %v124 = vpop.permute.xlu0 %123
    %vm125 = vcmask 195712
    %126 = vst.msk [vmem:[%s1] sm:$0xff] %vm125, %v124
    %s127 = scalar_lea.vmem [#allocation0], 66
    %v128 = vld [vmem:[%s127] ss:$8 sm:$0xf]
    %s129 = scalar_lea.vmem [#allocation0], 66
    %v130 = vld [vmem:[%s129] ss:$8 sm:$0xf0]
    %vm131 = vcmask 1047556
    %v132 = vsel %vm131, %v130, %v128
    %133 = vrot.lane.b32.xlu0 %v132, 16
    %v134 = vpop.permute.xlu0 %133
    %vm135 = vcmask 195712
    %s136 = scalar_lea.vmem %s1, 8
    %137 = vst.msk [vmem:[%s136] sm:$0xff] %vm135, %v134
    %s138 = scalar_lea.vmem [#allocation0], 1
    %v139 = vld [vmem:[%s138] ss:$8 sm:$0xf]
    %s140 = scalar_lea.vmem [#allocation0], 1
    %v141 = vld [vmem:[%s140] ss:$8 sm:$0xf0]
    %vm142 = vcmask 1047556
    %v143 = vsel %vm142, %v141, %v139
    %144 = vrot.lane.b32.xlu0 %v143, 8
    %v145 = vpop.permute.xlu0 %144
    %vm146 = vcmask 130112
    %147 = vst.msk [vmem:[%s1] sm:$0xff] %vm146, %v145
    %s148 = scalar_lea.vmem [#allocation0], 65
    %v149 = vld [vmem:[%s148] ss:$8 sm:$0xf]
    %s150 = scalar_lea.vmem [#allocation0], 65
    %v151 = vld [vmem:[%s150] ss:$8 sm:$0xf0]
    %vm152 = vcmask 1047556
    %v153 = vsel %vm152, %v151, %v149
    %154 = vrot.lane.b32.xlu0 %v153, 8
    %v155 = vpop.permute.xlu0 %154
    %vm156 = vcmask 130112
    %s157 = scalar_lea.vmem %s1, 8
    %158 = vst.msk [vmem:[%s157] sm:$0xff] %vm156, %v155

// kernel: tile.24
$region0: #{tile.24}
  #allocation0 [shape = 's32[1]{0}', space=sflag, size = 0x4, scoped, tag = 'scoped memory for tile.24']
  %s0 = inlined_call_operand.vmem [shape: f32[8,8], index: 0, kind: input, shape index: {}]
  %s1 = inlined_call_operand.vmem [shape: f32[2,8,2,8], index: 1, kind: output, shape index: {}]
  // Predicated region
  $region2: #{tile.24} parent=0 // pred_check
    _
  $region3: #{tile.24} parent=0 // pred_check_branch
    %3 = sbr.rel (0) target = $region5
  $region4: #{tile.24} parent=0 // pred_region
    _
  $region5: #{tile.24} parent=0 // pred_fallthru
    _
  %v4 = vld [vmem:[%s0] ss:$0 sm:$0xff]
  %5 = vst [vmem:[%s1] sm:$0x3] %v4
  %s6 = scalar_lea.vmem %s1, 16
  %7 = vst [vmem:[%s6] sm:$0x3] %v4
  %s8 = scalar_lea.vmem %s0, 1
  %v9 = vld [vmem:[%s8] ss:$0 sm:$0xff]
  %s10 = scalar_lea.vmem %s1, 2
  %11 = vst [vmem:[%s10] sm:$0x3] %v9
  %s12 = scalar_lea.vmem %s1, 18
  %13 = vst [vmem:[%s12] sm:$0x3] %v9
  %s14 = scalar_lea.vmem %s0, 2
  %v15 = vld [vmem:[%s14] ss:$0 sm:$0xff]
  %s16 = scalar_lea.vmem %s1, 4
  %17 = vst [vmem:[%s16] sm:$0x3] %v15
  %s18 = scalar_lea.vmem %s1, 20
  %19 = vst [vmem:[%s18] sm:$0x3] %v15
  %s20 = scalar_lea.vmem %s0, 3
  %v21 = vld [vmem:[%s20] ss:$0 sm:$0xff]
  %s22 = scalar_lea.vmem %s1, 6
  %23 = vst [vmem:[%s22] sm:$0x3] %v21
  %s24 = scalar_lea.vmem %s1, 22
  %25 = vst [vmem:[%s24] sm:$0x3] %v21
  %s26 = scalar_lea.vmem %s0, 4
  %v27 = vld [vmem:[%s26] ss:$0 sm:$0xff]
  %s28 = scalar_lea.vmem %s1, 8
  %29 = vst [vmem:[%s28] sm:$0x3] %v27
  %s30 = scalar_lea.vmem %s1, 24
  %31 = vst [vmem:[%s30] sm:$0x3] %v27
  %s32 = scalar_lea.vmem %s0, 5
  %v33 = vld [vmem:[%s32] ss:$0 sm:$0xff]
  %s34 = scalar_lea.vmem %s1, 10
  %35 = vst [vmem:[%s34] sm:$0x3] %v33
  %s36 = scalar_lea.vmem %s1, 26
  %37 = vst [vmem:[%s36] sm:$0x3] %v33
  %s38 = scalar_lea.vmem %s0, 6
  %v39 = vld [vmem:[%s38] ss:$0 sm:$0xff]
  %s40 = scalar_lea.vmem %s1, 12
  %41 = vst [vmem:[%s40] sm:$0x3] %v39
  %s42 = scalar_lea.vmem %s1, 28
  %43 = vst [vmem:[%s42] sm:$0x3] %v39
  %s44 = scalar_lea.vmem %s0, 7
  %v45 = vld [vmem:[%s44] ss:$0 sm:$0xff]
  %s46 = scalar_lea.vmem %s1, 14
  %47 = vst [vmem:[%s46] sm:$0x3] %v45
  %s48 = scalar_lea.vmem %s1, 30
  %49 = vst [vmem:[%s48] sm:$0x3] %v45

// kernel: tile.25
$region0: #{tile.25}
  %s0 = inlined_call_operand.vmem [shape: f32[2,8,2,8], index: 0, kind: input, shape index: {}]
  %s1 = inlined_call_operand.vmem [shape: f32[16,16], index: 1, kind: output, shape index: {}]
  $region1: #{tile.25} parent=0
    #allocation0 [shape = 'u8[65536]{0}', space=vmem, size = 0x10000, scoped, tag = 'scoped mem for input reshape']
    %s3 = sshll.u32 1, 2
    %s4 = ssub.s32 %s3, 1
    %s5 = smul.addr 2, 15
    %s6 = scalar_lea.vmem %s0, %s5
    %v7 = vld [vmem:[%s6] sm:%s4]
    %s8 = scalar_lea.vmem [#allocation0], 120
    %9 = vst [vmem:[%s8] sm:%s4] %v7
    %s10 = smul.addr 2, 14
    %s11 = scalar_lea.vmem %s0, %s10
    %v12 = vld [vmem:[%s11] sm:%s4]
    %s13 = scalar_lea.vmem [#allocation0], 112
    %14 = vst [vmem:[%s13] sm:%s4] %v12
    %s15 = smul.addr 2, 13
    %s16 = scalar_lea.vmem %s0, %s15
    %v17 = vld [vmem:[%s16] sm:%s4]
    %s18 = scalar_lea.vmem [#allocation0], 104
    %19 = vst [vmem:[%s18] sm:%s4] %v17
    %s20 = smul.addr 2, 12
    %s21 = scalar_lea.vmem %s0, %s20
    %v22 = vld [vmem:[%s21] sm:%s4]
    %s23 = scalar_lea.vmem [#allocation0], 96
    %24 = vst [vmem:[%s23] sm:%s4] %v22
    %s25 = smul.addr 2, 11
    %s26 = scalar_lea.vmem %s0, %s25
    %v27 = vld [vmem:[%s26] sm:%s4]
    %s28 = scalar_lea.vmem [#allocation0], 88
    %29 = vst [vmem:[%s28] sm:%s4] %v27
    %s30 = smul.addr 2, 10
    %s31 = scalar_lea.vmem %s0, %s30
    %v32 = vld [vmem:[%s31] sm:%s4]
    %s33 = scalar_lea.vmem [#allocation0], 80
    %34 = vst [vmem:[%s33] sm:%s4] %v32
    %s35 = smul.addr 2, 9
    %s36 = scalar_lea.vmem %s0, %s35
    %v37 = vld [vmem:[%s36] sm:%s4]
    %s38 = scalar_lea.vmem [#allocation0], 72
    %39 = vst [vmem:[%s38] sm:%s4] %v37
    %s40 = smul.addr 2, 8
    %s41 = scalar_lea.vmem %s0, %s40
    %v42 = vld [vmem:[%s41] sm:%s4]
    %s43 = scalar_lea.vmem [#allocation0], 64
    %44 = vst [vmem:[%s43] sm:%s4] %v42
    %s45 = smul.addr 2, 7
    %s46 = scalar_lea.vmem %s0, %s45
    %v47 = vld [vmem:[%s46] sm:%s4]
    %s48 = scalar_lea.vmem [#allocation0], 56
    %49 = vst [vmem:[%s48] sm:%s4] %v47
    %s50 = smul.addr 2, 6
    %s51 = scalar_lea.vmem %s0, %s50
    %v52 = vld [vmem:[%s51] sm:%s4]
    %s53 = scalar_lea.vmem [#allocation0], 48
    %54 = vst [vmem:[%s53] sm:%s4] %v52
    %s55 = smul.addr 2, 5
    %s56 = scalar_lea.vmem %s0, %s55
    %v57 = vld [vmem:[%s56] sm:%s4]
    %s58 = scalar_lea.vmem [#allocation0], 40
    %59 = vst [vmem:[%s58] sm:%s4] %v57
    %s60 = smul.addr 2, 4
    %s61 = scalar_lea.vmem %s0, %s60
    %v62 = vld [vmem:[%s61] sm:%s4]
    %s63 = scalar_lea.vmem [#allocation0], 32
    %64 = vst [vmem:[%s63] sm:%s4] %v62
    %s65 = smul.addr 2, 3
    %s66 = scalar_lea.vmem %s0, %s65
    %v67 = vld [vmem:[%s66] sm:%s4]
    %s68 = scalar_lea.vmem [#allocation0], 24
    %69 = vst [vmem:[%s68] sm:%s4] %v67
    %s70 = smul.addr 2, 2
    %s71 = scalar_lea.vmem %s0, %s70
    %v72 = vld [vmem:[%s71] sm:%s4]
    %s73 = scalar_lea.vmem [#allocation0], 16
    %74 = vst [vmem:[%s73] sm:%s4] %v72
    %s75 = scalar_lea.vmem %s0, 2
    %v76 = vld [vmem:[%s75] sm:%s4]
    %s77 = scalar_lea.vmem [#allocation0], 8
    %78 = vst [vmem:[%s77] sm:%s4] %v76
    %v79 = vld [vmem:[%s0] sm:%s4]
    %80 = vst [vmem:[#allocation0] sm:%s4] %v79
    %v81 = vld [vmem:[#allocation0] ss:$8 sm:$0xf]
    %v82 = vld [vmem:[#allocation0] ss:$8 sm:$0xf0]
    %vm83 = vcmask 1047556
    %v84 = vsel %vm83, %v82, %v81
    %vm85 = vcmask 64512
    %86 = vst.msk [vmem:[%s1] sm:$0xff] %vm85, %v84
    %s87 = scalar_lea.vmem [#allocation0], 64
    %v88 = vld [vmem:[%s87] ss:$8 sm:$0xf]
    %s89 = scalar_lea.vmem [#allocation0], 64
    %v90 = vld [vmem:[%s89] ss:$8 sm:$0xf0]
    %vm91 = vcmask 1047556
    %v92 = vsel %vm91, %v90, %v88
    %vm93 = vcmask 64512
    %s94 = scalar_lea.vmem %s1, 8
    %95 = vst.msk [vmem:[%s94] sm:$0xff] %vm93, %v92
    %s96 = scalar_lea.vmem [#allocation0], 1
    %v97 = vld [vmem:[%s96] ss:$8 sm:$0xf]
    %s98 = scalar_lea.vmem [#allocation0], 1
    %v99 = vld [vmem:[%s98] ss:$8 sm:$0xf0]
    %vm100 = vcmask 1047556
    %v101 = vsel %vm100, %v99, %v97
    %102 = vrot.lane.b32.xlu0 %v101, 8
    %v103 = vpop.permute.xlu0 %102
    %vm104 = vcmask 130112
    %105 = vst.msk [vmem:[%s1] sm:$0xff] %vm104, %v103
    %s106 = scalar_lea.vmem [#allocation0], 65
    %v107 = vld [vmem:[%s106] ss:$8 sm:$0xf]
    %s108 = scalar_lea.vmem [#allocation0], 65
    %v109 = vld [vmem:[%s108] ss:$8 sm:$0xf0]
    %vm110 = vcmask 1047556
    %v111 = vsel %vm110, %v109, %v107
    %112 = vrot.lane.b32.xlu0 %v111, 8
    %v113 = vpop.permute.xlu0 %112
    %vm114 = vcmask 130112
    %s115 = scalar_lea.vmem %s1, 8
    %116 = vst.msk [vmem:[%s115] sm:$0xff] %vm114, %v113

// kernel: eq.8
$region0: #{eq.8}
  %s0 = inlined_call_operand.vmem [shape: s32[2,8], index: 0, kind: input, shape index: {}]
  %s1 = inlined_call_operand.vmem [shape: s32[16], index: 1, kind: output, shape index: {}]
  $region1: #{eq.8} parent=0
    #allocation0 [shape = 'u8[4096]{0}', space=vmem, size = 0x1000, scoped, tag = 'scoped mem for output reshape']
    #allocation1 [shape = 'u8[4096]{0}', space=vmem, size = 0x1000, scoped, tag = 'scoped mem for input reshape']
    %s3 = sshll.u32 1, 2
    %s4 = ssub.s32 %s3, 1
    %v5 = vld [vmem:[%s0] sm:%s4]
    %6 = vst [vmem:[#allocation1] sm:%s4] %v5
    %v7 = vld [vmem:[#allocation1] sm:$0x1]
    %vm8 = vcmask 64512
    %9 = vst.msk [vmem:[#allocation0] sm:$0x1] %vm8, %v7
    %s10 = scalar_lea.vmem [#allocation1], 1
    %v11 = vld [vmem:[%s10] sm:$0x1]
    %12 = vrot.lane.b32.xlu0 %v11, 8
    %v13 = vpop.permute.xlu0 %12
    %vm14 = vcmask 130112
    %15 = vst.msk [vmem:[#allocation0] sm:$0x1] %vm14, %v13
    %s17 = sshll.u32 1, 1
    %s18 = ssub.s32 %s17, 1
    %v20 = vld [vmem:[#allocation0] sm:%s18]
    %s21 = sshll.u32 1, 1
    %s22 = ssub.s32 %s21, 1
    %23 = vst [vmem:[%s1] sm:%s22] %v20

// kernel: transformer_block.1
$region0: #{transformer_block.1}
  #allocation0 [shape = 'u32[]', space=smem, size = 0x4, offset = 0x4, fixed_abs, tag = 'smem constant byte address 0x4 - core index']
  #allocation1 [shape = 'u32[144,128]{1,0:T(1,128)}', space=vmem, size = 0x12000, scoped, tag = 'internal scratch']
  %s0 = inlined_call_operand.vmem [shape: f32[16,32], index: 0, kind: input, shape index: {}]
  %s1 = inlined_call_operand.vmem [shape: f32[16,32], index: 1, kind: input, shape index: {}]
  %s2 = inlined_call_operand.vmem [shape: f32[16,32], index: 2, kind: input, shape index: {}]
  %s3 = inlined_call_operand.vmem [shape: f32[16,16], index: 3, kind: input, shape index: {}]
  %s4 = inlined_call_operand.vmem [shape: f32[1,32], index: 4, kind: input, shape index: {}]
  %s5 = inlined_call_operand.vmem [shape: bf16[32,160], index: 5, kind: input, shape index: {}]
  %s6 = inlined_call_operand.vmem [shape: bf16[32,32], index: 6, kind: input, shape index: {}]
  %s7 = inlined_call_operand.vmem [shape: f32[1,32], index: 7, kind: input, shape index: {}]
  %s8 = inlined_call_operand.vmem [shape: bf16[32,128], index: 8, kind: input, shape index: {}]
  %s9 = inlined_call_operand.vmem [shape: bf16[64,32], index: 9, kind: input, shape index: {}]
  %s10 = inlined_call_operand.hbm [shape: f32[16,32], index: 10, kind: output, shape index: {}]
  %s11 = sld [smem:[#allocation0]]
  $region50: #{transformer_block.1} parent=0
    _
  %s13 = ssub.s32 1, %s11
  %s14 = scalar_select 0, %s13, %s11
  $region1: #{transformer_block.1} parent=0
    #allocation2 [shape = 'u8[8192]{0}', space=vmem, size = 0x2000, scoped, tag = 'output window, operand 0, single buffered']
    #allocation3 [shape = 's32[1]{0}', space=sflag, size = 0x4, scoped, tag = 'scoped memory for transformer_block.1']
    %15 = vsyncpa [#allocation3], 0
    // Predicated region
    $region2: #{transformer_block.1} parent=1 // pred_check
      _
    $region3: #{transformer_block.1} parent=1 // pred_check_branch
      %17 = sbr.rel (0) target = $region5
    $region4: #{transformer_block.1} parent=1 // pred_region
      _
    $region5: #{transformer_block.1} parent=1 // pred_fallthru
      _
    // Predicated region
    $region6: #{transformer_block.1} parent=1 // pred_check
      _
    $region7: #{transformer_block.1} parent=1 // pred_check_branch
      %19 = sbr.rel (0) target = $region9
    $region8: #{transformer_block.1} parent=1 // pred_region
      _
    $region9: #{transformer_block.1} parent=1 // pred_fallthru
      _
    // Predicated region
    $region10: #{transformer_block.1} parent=1 // pred_check
      _
    $region11: #{transformer_block.1} parent=1 // pred_check_branch
      %21 = sbr.rel (0) target = $region13
    $region12: #{transformer_block.1} parent=1 // pred_region
      _
    $region13: #{transformer_block.1} parent=1 // pred_fallthru
      _
    // Predicated region
    $region14: #{transformer_block.1} parent=1 // pred_check
      _
    $region15: #{transformer_block.1} parent=1 // pred_check_branch
      %23 = sbr.rel (0) target = $region17
    $region16: #{transformer_block.1} parent=1 // pred_region
      _
    $region17: #{transformer_block.1} parent=1 // pred_fallthru
      _
    // Predicated region
    $region18: #{transformer_block.1} parent=1 // pred_check
      _
    $region19: #{transformer_block.1} parent=1 // pred_check_branch
      %25 = sbr.rel (0) target = $region21
    $region20: #{transformer_block.1} parent=1 // pred_region
      _
    $region21: #{transformer_block.1} parent=1 // pred_fallthru
      _
    // Predicated region
    $region22: #{transformer_block.1} parent=1 // pred_check
      _
    $region23: #{transformer_block.1} parent=1 // pred_check_branch
      %27 = sbr.rel (0) target = $region25
    $region24: #{transformer_block.1} parent=1 // pred_region
      _
    $region25: #{transformer_block.1} parent=1 // pred_fallthru
      _
    // Predicated region
    $region26: #{transformer_block.1} parent=1 // pred_check
      _
    $region27: #{transformer_block.1} parent=1 // pred_check_branch
      %29 = sbr.rel (0) target = $region29
    $region28: #{transformer_block.1} parent=1 // pred_region
      _
    $region29: #{transformer_block.1} parent=1 // pred_fallthru
      _
    // Predicated region
    $region30: #{transformer_block.1} parent=1 // pred_check
      _
    $region31: #{transformer_block.1} parent=1 // pred_check_branch
      %31 = sbr.rel (0) target = $region33
    $region32: #{transformer_block.1} parent=1 // pred_region
      _
    $region33: #{transformer_block.1} parent=1 // pred_fallthru
      _
    // Predicated region
    $region34: #{transformer_block.1} parent=1 // pred_check
      _
    $region35: #{transformer_block.1} parent=1 // pred_check_branch
      %33 = sbr.rel (0) target = $region37
    $region36: #{transformer_block.1} parent=1 // pred_region
      _
    $region37: #{transformer_block.1} parent=1 // pred_fallthru
      _
    // Predicated region
    $region38: #{transformer_block.1} parent=1 // pred_check
      _
    $region39: #{transformer_block.1} parent=1 // pred_check_branch
      %35 = sbr.rel (0) target = $region41
    $region40: #{transformer_block.1} parent=1 // pred_region
      _
    $region41: #{transformer_block.1} parent=1 // pred_fallthru
      _
    %v37 = vld [vmem:[%s0] sm:$0xff]
    %v38 = vld [vmem:[%s0 + $0x8] sm:$0xff]
    %v39 = vld [vmem:[%s4] sm:$0x1]
    %v40 = vmul.f32 %v37, %v37
    %v41 = vmul.f32 %v38, %v38
    %vm42 = vcmask 261120
    %v43 = vsel %vm42, %v40, 0.0
    %44 = vadd.xlane.f32.xlu0 %v43
    %v45 = vpop.xlane.xlu0 %44
    %v46 = vsel %vm42, %v41, 0.0
    %47 = vadd.xlane.f32.xlu0 %v46
    %v48 = vpop.xlane.xlu0 %47
    %v49 = vrcp.pop 32.0
    %v50 = vmul.f32 %v45, %v49
    %v51 = vmul.f32 %v48, %v49
    %v52 = vadd.f32 %v50, 1e-06
    %v53 = vadd.f32 %v51, 1e-06
    %v54 = vrsqrt.pop %v52
    %v55 = vrsqrt.pop %v53
    %v56 = vmul.f32 %v37, %v54
    %v57 = vmul.f32 %v38, %v55
    %v59 = vlaneseq
    %v60 = vshrl.u32 %v59, 7
    %v61 = vsub.s32 0, %v60
    %v62 = vrot.slane %v39, %v61
    %v64 = vmul.f32 %v56, %v62
    %v65 = vmul.f32 %v57, %v62
    %v66 = vpack.c.bf16 %v65, %v64
    %v67 = vld [vmem:[%s5] sm:$0xff]
    %v68 = vld [vmem:[%s5 + $0x8] sm:$0xff]
    %v69 = vld [vmem:[%s5 + $0x10] sm:$0xff]
    %v70 = vld [vmem:[%s5 + $0x18] sm:$0xff]
    %v75 = vunpack.c.l.b16 %v67
    %v76 = vunpack.c.h.b16 %v67
    %v77 = vunpack.c.l.b16 %v68
    %v78 = vunpack.c.h.b16 %v68
    %v79 = vunpack.c.l.b16 %v69
    %v80 = vunpack.c.h.b16 %v69
    %v81 = vunpack.c.l.b16 %v70
    %v82 = vunpack.c.h.b16 %v70
    %v83 = vpack.c.b16 %v77, %v75
    %v84 = vpack.c.b16 %v78, %v76
    %v85 = vpack.c.b16 %v81, %v79
    %v86 = vpack.c.b16 %v82, %v80
    %v92 = vsel %vm42, %v66, 0
    %94 = vmatprep.subr.bf16.mxu0 0
    %95 = vmatpush1.bf16.msra.mxu0 0
    %96 = vmatprep.subr.bf16.mxu0 0
    %97 = vmatpush1.bf16.msra.mxu0 0
    %98 = vmatprep.subr.bf16.mxu0 0
    %99 = vmatpush1.bf16.msra.mxu0 0
    %100 = vmatprep.subr.bf16.mxu0 0
    %101 = vmatpush1.bf16.msra.mxu0 0
    %102 = vmatprep.subr.bf16.mxu0 0
    %103 = vmatpush1.bf16.msra.mxu0 0
    %104 = vmatprep.subr.bf16.mxu0 0
    %105 = vmatpush1.bf16.msra.mxu0 0
    %106 = vmatprep.subr.bf16.mxu0 %v86
    %107 = vmatpush1.bf16.msra.mxu0 %v85
    %108 = vmatprep.subr.bf16.mxu0 %v84
    %109 = vmatpush1.bf16.msra.mxu0 %v83
    %110 = vmatprep.subr.bf16.mxu0 0
    %111 = vmatpush2.bf16.msra.mxu0 0
    %112 = vmatprep.subr.bf16.mxu0 0
    %113 = vmatpush2.bf16.msra.mxu0 0
    %114 = vmatprep.subr.bf16.mxu0 0
    %115 = vmatpush2.bf16.msra.mxu0 0
    %116 = vmatprep.subr.bf16.mxu0 0
    %117 = vmatpush2.bf16.msra.mxu0 0
    %118 = vmatprep.subr.bf16.mxu0 0
    %119 = vmatpush2.bf16.msra.mxu0 0
    %120 = vmatprep.subr.bf16.mxu0 0
    %121 = vmatpush2.bf16.msra.mxu0 0
    %122 = vmatprep.subr.bf16.mxu0 0
    %123 = vmatpush2.bf16.msra.mxu0 0
    %124 = vmatprep.subr.bf16.mxu0 0
    %125 = vmatpush2.bf16.msra.mxu0 0
    %126 = vmatprep.mubr.bf16.mxu0 0
    %127 = vmatmul.mubr.bf16.gmra.mxu0 %v92
    %v128 = vpop.f32.mrf.mxu0
    %v129 = vadd.f32 0.0, %v128
    %v130 = vpop.f32.mrf.mxu0
    %v131 = vadd.f32 0.0, %v130
    %v132 = vpop.f32.mrf.mxu0
    %v133 = vadd.f32 0.0, %v132
    %v134 = vpop.f32.mrf.mxu0
    %v135 = vadd.f32 0.0, %v134
    %136 = vdwg.mxu0
    %v137 = vld [vmem:[%s1] sm:$0xff]
    %v138 = vld [vmem:[%s1 + $0x8] sm:$0xff]
    %v139 = vld [vmem:[%s2] sm:$0xff]
    %v140 = vld [vmem:[%s2 + $0x8] sm:$0xff]
    %v141 = vmul.f32 %v129, %v137
    %v142 = vmul.f32 %v133, %v138
    %145 = vrot.lane.b32.xlu0 %v139, 32
    %v146 = vpop.permute.xlu0 %145
    %147 = vrot.lane.b32.xlu0 %v140, 32
    %v148 = vpop.permute.xlu0 %147
    %v151 = vmul.f32 %v129, %v146
    %v152 = vmul.f32 %v133, %v148
    %155 = vrot.lane.b32.xlu0 %v151, 96
    %v156 = vpop.permute.xlu0 %155
    %157 = vrot.lane.b32.xlu0 %v152, 96
    %v158 = vpop.permute.xlu0 %157
    %v161 = vadd.f32 %v141, %v156
    %v162 = vadd.f32 %v142, %v158
    %v163 = vpack.c.bf16 %v162, %v161
    %166 = vrot.lane.b32.xlu0 %v137, 64
    %v167 = vpop.permute.xlu0 %166
    %168 = vrot.lane.b32.xlu0 %v138, 64
    %v169 = vpop.permute.xlu0 %168
    %v172 = vmul.f32 %v129, %v167
    %v173 = vmul.f32 %v133, %v169
    %174 = vrot.lane.b32.xlu0 %v139, 96
    %v175 = vpop.permute.xlu0 %174
    %176 = vrot.lane.b32.xlu0 %v140, 96
    %v177 = vpop.permute.xlu0 %176
    %v180 = vmul.f32 %v129, %v175
    %v181 = vmul.f32 %v133, %v177
    %184 = vrot.lane.b32.xlu0 %v180, 96
    %v185 = vpop.permute.xlu0 %184
    %186 = vrot.lane.b32.xlu0 %v181, 96
    %v187 = vpop.permute.xlu0 %186
    %v190 = vadd.f32 %v172, %v185
    %v191 = vadd.f32 %v173, %v187
    %v192 = vpack.c.bf16 %v191, %v190
    %v193 = vpack.c.bf16 %v135, %v131
    %v194 = vld [vmem:[%s3] sm:$0xff]
    %v195 = vld [vmem:[%s3 + $0x8] sm:$0xff]
    %197 = vrot.lane.b32.xlu0 %v192, 64
    %v198 = vpop.permute.xlu0 %197
    %vm199 = vcmask 64512
    %v201 = vsel %vm199, %v163, 0
    %v204 = vsel %vm199, %v198, 0
    %206 = vmatprep.subr.bf16.mxu0 0
    %207 = vmatpush1.bf16.xpose.msra.mxu0 0
    %208 = vmatprep.subr.bf16.mxu0 0
    %209 = vmatpush1.bf16.xpose.msra.mxu0 0
    %210 = vmatprep.subr.bf16.mxu0 0
    %211 = vmatpush1.bf16.xpose.msra.mxu0 0
    %212 = vmatprep.subr.bf16.mxu0 0
    %213 = vmatpush1.bf16.xpose.msra.mxu0 0
    %214 = vmatprep.subr.bf16.mxu0 0
    %215 = vmatpush1.bf16.xpose.msra.mxu0 0
    %216 = vmatprep.subr.bf16.mxu0 0
    %217 = vmatpush1.bf16.xpose.msra.mxu0 0
    %218 = vmatprep.subr.bf16.mxu0 0
    %219 = vmatpush1.bf16.xpose.msra.mxu0 0
    %220 = vmatprep.subr.bf16.mxu0 0
    %221 = vmatpush1.bf16.xpose.msra.mxu0 %v204
    %222 = vmatprep.subr.bf16.mxu0 0
    %223 = vmatpush2.bf16.xpose.msra.mxu0 0
    %224 = vmatprep.subr.bf16.mxu0 0
    %225 = vmatpush2.bf16.xpose.msra.mxu0 0
    %226 = vmatprep.subr.bf16.mxu0 0
    %227 = vmatpush2.bf16.xpose.msra.mxu0 0
    %228 = vmatprep.subr.bf16.mxu0 0
    %229 = vmatpush2.bf16.xpose.msra.mxu0 0
    %230 = vmatprep.subr.bf16.mxu0 0
    %231 = vmatpush2.bf16.xpose.msra.mxu0 0
    %232 = vmatprep.subr.bf16.mxu0 0
    %233 = vmatpush2.bf16.xpose.msra.mxu0 0
    %234 = vmatprep.subr.bf16.mxu0 0
    %235 = vmatpush2.bf16.xpose.msra.mxu0 0
    %236 = vmatprep.subr.bf16.mxu0 0
    %237 = vmatpush2.bf16.xpose.msra.mxu0 0
    %238 = vmatprep.mubr.bf16.mxu0 0
    %239 = vmatmul.mubr.bf16.gmra.mxu0 %v201
    %v240 = vpop.f32.mrf.mxu0
    %v241 = vadd.f32 %v194, %v240
    %v242 = vpop.f32.mrf.mxu0
    %v243 = vpop.f32.mrf.mxu0
    %v244 = vadd.f32 %v195, %v243
    %v245 = vpop.f32.mrf.mxu0
    %246 = vdwg.mxu0
    %vm247 = vcmask 130048
    %v248 = vsel %vm247, %v241, -inf
    %249 = vmax.xlane.f32.xlu0 %v248
    %v250 = vpop.xlane.xlu0 %249
    %v251 = vsel %vm247, %v244, -inf
    %252 = vmax.xlane.f32.xlu0 %v251
    %v253 = vpop.xlane.xlu0 %252
    %v254 = vsub.f32 %v241, %v250
    %v255 = vsub.f32 %v244, %v253
    %v256 = vmul.f32 %v254, 1.442695
    %v257 = vpow.pop %v256
    %v258 = vmul.f32 %v255, 1.442695
    %v259 = vpow.pop %v258
    %v260 = vsel %vm247, %v257, 0.0
    %261 = vadd.xlane.f32.xlu0 %v260
    %v262 = vpop.xlane.xlu0 %261
    %v263 = vsel %vm247, %v259, 0.0
    %264 = vadd.xlane.f32.xlu0 %v263
    %v265 = vpop.xlane.xlu0 %264
    %v266 = vrcp.pop %v262
    %v267 = vrcp.pop %v265
    %v268 = vmul.f32 %v257, %v266
    %v269 = vmul.f32 %v259, %v267
    %v270 = vpack.c.bf16 %v269, %v268
    %v272 = vsel %vm247, %v270, 0
    %274 = vmatprep.subr.bf16.mxu0 0
    %275 = vmatpush1.bf16.msra.mxu0 0
    %276 = vmatprep.subr.bf16.mxu0 0
    %277 = vmatpush1.bf16.msra.mxu0 0
    %278 = vmatprep.subr.bf16.mxu0 0
    %279 = vmatpush1.bf16.msra.mxu0 0
    %280 = vmatprep.subr.bf16.mxu0 0
    %281 = vmatpush1.bf16.msra.mxu0 0
    %282 = vmatprep.subr.bf16.mxu0 0
    %283 = vmatpush1.bf16.msra.mxu0 0
    %284 = vmatprep.subr.bf16.mxu0 0
    %285 = vmatpush1.bf16.msra.mxu0 0
    %286 = vmatprep.subr.bf16.mxu0 0
    %287 = vmatpush1.bf16.msra.mxu0 0
    %288 = vmatprep.subr.bf16.mxu0 0
    %289 = vmatpush1.bf16.msra.mxu0 %v193
    %290 = vmatprep.subr.bf16.mxu0 0
    %291 = vmatpush2.bf16.msra.mxu0 0
    %292 = vmatprep.subr.bf16.mxu0 0
    %293 = vmatpush2.bf16.msra.mxu0 0
    %294 = vmatprep.subr.bf16.mxu0 0
    %295 = vmatpush2.bf16.msra.mxu0 0
    %296 = vmatprep.subr.bf16.mxu0 0
    %297 = vmatpush2.bf16.msra.mxu0 0
    %298 = vmatprep.subr.bf16.mxu0 0
    %299 = vmatpush2.bf16.msra.mxu0 0
    %300 = vmatprep.subr.bf16.mxu0 0
    %301 = vmatpush2.bf16.msra.mxu0 0
    %302 = vmatprep.subr.bf16.mxu0 0
    %303 = vmatpush2.bf16.msra.mxu0 0
    %304 = vmatprep.subr.bf16.mxu0 0
    %305 = vmatpush2.bf16.msra.mxu0 0
    %306 = vmatprep.mubr.bf16.mxu0 0
    %307 = vmatmul.mubr.bf16.gmra.mxu0 %v272
    %v308 = vpop.f32.mrf.mxu0
    %v309 = vadd.f32 0.0, %v308
    %v310 = vpop.f32.mrf.mxu0
    %v311 = vpop.f32.mrf.mxu0
    %v312 = vadd.f32 0.0, %v311
    %v313 = vpop.f32.mrf.mxu0
    %314 = vdwg.mxu0
    %316 = vrot.lane.b32.xlu0 %v163, 120
    %v317 = vpop.permute.xlu0 %316
    %318 = vrot.lane.b32.xlu0 %v192, 56
    %v319 = vpop.permute.xlu0 %318
    %v321 = vsel %vm199, %v317, 0
    %v324 = vsel %vm199, %v319, 0
    %326 = vmatprep.subr.bf16.mxu0 0
    %327 = vmatpush1.bf16.xpose.msra.mxu0 0
    %328 = vmatprep.subr.bf16.mxu0 0
    %329 = vmatpush1.bf16.xpose.msra.mxu0 0
    %330 = vmatprep.subr.bf16.mxu0 0
    %331 = vmatpush1.bf16.xpose.msra.mxu0 0
    %332 = vmatprep.subr.bf16.mxu0 0
    %333 = vmatpush1.bf16.xpose.msra.mxu0 0
    %334 = vmatprep.subr.bf16.mxu0 0
    %335 = vmatpush1.bf16.xpose.msra.mxu0 0
    %336 = vmatprep.subr.bf16.mxu0 0
    %337 = vmatpush1.bf16.xpose.msra.mxu0 0
    %338 = vmatprep.subr.bf16.mxu0 0
    %339 = vmatpush1.bf16.xpose.msra.mxu0 0
    %340 = vmatprep.subr.bf16.mxu0 0
    %341 = vmatpush1.bf16.xpose.msra.mxu0 %v324
    %342 = vmatprep.subr.bf16.mxu0 0
    %343 = vmatpush2.bf16.xpose.msra.mxu0 0
    %344 = vmatprep.subr.bf16.mxu0 0
    %345 = vmatpush2.bf16.xpose.msra.mxu0 0
    %346 = vmatprep.subr.bf16.mxu0 0
    %347 = vmatpush2.bf16.xpose.msra.mxu0 0
    %348 = vmatprep.subr.bf16.mxu0 0
    %349 = vmatpush2.bf16.xpose.msra.mxu0 0
    %350 = vmatprep.subr.bf16.mxu0 0
    %351 = vmatpush2.bf16.xpose.msra.mxu0 0
    %352 = vmatprep.subr.bf16.mxu0 0
    %353 = vmatpush2.bf16.xpose.msra.mxu0 0
    %354 = vmatprep.subr.bf16.mxu0 0
    %355 = vmatpush2.bf16.xpose.msra.mxu0 0
    %356 = vmatprep.subr.bf16.mxu0 0
    %357 = vmatpush2.bf16.xpose.msra.mxu0 0
    %358 = vmatprep.mubr.bf16.mxu0 0
    %359 = vmatmul.mubr.bf16.gmra.mxu0 %v321
    %v360 = vpop.f32.mrf.mxu0
    %v361 = vadd.f32 %v194, %v360
    %v362 = vpop.f32.mrf.mxu0
    %v363 = vpop.f32.mrf.mxu0
    %v364 = vadd.f32 %v195, %v363
    %v365 = vpop.f32.mrf.mxu0
    %366 = vdwg.mxu0
    %v367 = vsel %vm247, %v361, -inf
    %368 = vmax.xlane.f32.xlu0 %v367
    %v369 = vpop.xlane.xlu0 %368
    %v370 = vsel %vm247, %v364, -inf
    %371 = vmax.xlane.f32.xlu0 %v370
    %v372 = vpop.xlane.xlu0 %371
    %v373 = vsub.f32 %v361, %v369
    %v374 = vsub.f32 %v364, %v372
    %v375 = vmul.f32 %v373, 1.442695
    %v376 = vpow.pop %v375
    %v377 = vmul.f32 %v374, 1.442695
    %v378 = vpow.pop %v377
    %v379 = vsel %vm247, %v376, 0.0
    %380 = vadd.xlane.f32.xlu0 %v379
    %v381 = vpop.xlane.xlu0 %380
    %v382 = vsel %vm247, %v378, 0.0
    %383 = vadd.xlane.f32.xlu0 %v382
    %v384 = vpop.xlane.xlu0 %383
    %v385 = vrcp.pop %v381
    %v386 = vrcp.pop %v384
    %v387 = vmul.f32 %v376, %v385
    %v388 = vmul.f32 %v378, %v386
    %v389 = vpack.c.bf16 %v388, %v387
    %391 = vrot.lane.b32.xlu0 %v193, 120
    %v392 = vpop.permute.xlu0 %391
    %v395 = vsel %vm247, %v389, 0
    %397 = vmatprep.subr.bf16.mxu0 0
    %398 = vmatpush1.bf16.msra.mxu0 0
    %399 = vmatprep.subr.bf16.mxu0 0
    %400 = vmatpush1.bf16.msra.mxu0 0
    %401 = vmatprep.subr.bf16.mxu0 0
    %402 = vmatpush1.bf16.msra.mxu0 0
    %403 = vmatprep.subr.bf16.mxu0 0
    %404 = vmatpush1.bf16.msra.mxu0 0
    %405 = vmatprep.subr.bf16.mxu0 0
    %406 = vmatpush1.bf16.msra.mxu0 0
    %407 = vmatprep.subr.bf16.mxu0 0
    %408 = vmatpush1.bf16.msra.mxu0 0
    %409 = vmatprep.subr.bf16.mxu0 0
    %410 = vmatpush1.bf16.msra.mxu0 0
    %411 = vmatprep.subr.bf16.mxu0 0
    %412 = vmatpush1.bf16.msra.mxu0 %v392
    %413 = vmatprep.subr.bf16.mxu0 0
    %414 = vmatpush2.bf16.msra.mxu0 0
    %415 = vmatprep.subr.bf16.mxu0 0
    %416 = vmatpush2.bf16.msra.mxu0 0
    %417 = vmatprep.subr.bf16.mxu0 0
    %418 = vmatpush2.bf16.msra.mxu0 0
    %419 = vmatprep.subr.bf16.mxu0 0
    %420 = vmatpush2.bf16.msra.mxu0 0
    %421 = vmatprep.subr.bf16.mxu0 0
    %422 = vmatpush2.bf16.msra.mxu0 0
    %423 = vmatprep.subr.bf16.mxu0 0
    %424 = vmatpush2.bf16.msra.mxu0 0
    %425 = vmatprep.subr.bf16.mxu0 0
    %426 = vmatpush2.bf16.msra.mxu0 0
    %427 = vmatprep.subr.bf16.mxu0 0
    %428 = vmatpush2.bf16.msra.mxu0 0
    %429 = vmatprep.mubr.bf16.mxu0 0
    %430 = vmatmul.mubr.bf16.gmra.mxu0 %v395
    %v431 = vpop.f32.mrf.mxu0
    %v432 = vadd.f32 0.0, %v431
    %v433 = vpop.f32.mrf.mxu0
    %v434 = vpop.f32.mrf.mxu0
    %v435 = vadd.f32 0.0, %v434
    %v436 = vpop.f32.mrf.mxu0
    %437 = vdwg.mxu0
    %438 = vrot.lane.b32.xlu0 %v163, 112
    %v439 = vpop.permute.xlu0 %438
    %440 = vrot.lane.b32.xlu0 %v192, 48
    %v441 = vpop.permute.xlu0 %440
    %v443 = vsel %vm199, %v439, 0
    %v446 = vsel %vm199, %v441, 0
    %448 = vmatprep.subr.bf16.mxu0 0
    %449 = vmatpush1.bf16.xpose.msra.mxu0 0
    %450 = vmatprep.subr.bf16.mxu0 0
    %451 = vmatpush1.bf16.xpose.msra.mxu0 0
    %452 = vmatprep.subr.bf16.mxu0 0
    %453 = vmatpush1.bf16.xpose.msra.mxu0 0
    %454 = vmatprep.subr.bf16.mxu0 0
    %455 = vmatpush1.bf16.xpose.msra.mxu0 0
    %456 = vmatprep.subr.bf16.mxu0 0
    %457 = vmatpush1.bf16.xpose.msra.mxu0 0
    %458 = vmatprep.subr.bf16.mxu0 0
    %459 = vmatpush1.bf16.xpose.msra.mxu0 0
    %460 = vmatprep.subr.bf16.mxu0 0
    %461 = vmatpush1.bf16.xpose.msra.mxu0 0
    %462 = vmatprep.subr.bf16.mxu0 0
    %463 = vmatpush1.bf16.xpose.msra.mxu0 %v446
    %464 = vmatprep.subr.bf16.mxu0 0
    %465 = vmatpush2.bf16.xpose.msra.mxu0 0
    %466 = vmatprep.subr.bf16.mxu0 0
    %467 = vmatpush2.bf16.xpose.msra.mxu0 0
    %468 = vmatprep.subr.bf16.mxu0 0
    %469 = vmatpush2.bf16.xpose.msra.mxu0 0
    %470 = vmatprep.subr.bf16.mxu0 0
    %471 = vmatpush2.bf16.xpose.msra.mxu0 0
    %472 = vmatprep.subr.bf16.mxu0 0
    %473 = vmatpush2.bf16.xpose.msra.mxu0 0
    %474 = vmatprep.subr.bf16.mxu0 0
    %475 = vmatpush2.bf16.xpose.msra.mxu0 0
    %476 = vmatprep.subr.bf16.mxu0 0
    %477 = vmatpush2.bf16.xpose.msra.mxu0 0
    %478 = vmatprep.subr.bf16.mxu0 0
    %479 = vmatpush2.bf16.xpose.msra.mxu0 0
    %480 = vmatprep.mubr.bf16.mxu0 0
    %481 = vmatmul.mubr.bf16.gmra.mxu0 %v443
    %v482 = vpop.f32.mrf.mxu0
    %v483 = vadd.f32 %v194, %v482
    %v484 = vpop.f32.mrf.mxu0
    %v485 = vpop.f32.mrf.mxu0
    %v486 = vadd.f32 %v195, %v485
    %v487 = vpop.f32.mrf.mxu0
    %488 = vdwg.mxu0
    %v489 = vsel %vm247, %v483, -inf
    %490 = vmax.xlane.f32.xlu0 %v489
    %v491 = vpop.xlane.xlu0 %490
    %v492 = vsel %vm247, %v486, -inf
    %493 = vmax.xlane.f32.xlu0 %v492
    %v494 = vpop.xlane.xlu0 %493
    %v495 = vsub.f32 %v483, %v491
    %v496 = vsub.f32 %v486, %v494
    %v497 = vmul.f32 %v495, 1.442695
    %v498 = vpow.pop %v497
    %v499 = vmul.f32 %v496, 1.442695
    %v500 = vpow.pop %v499
    %v501 = vsel %vm247, %v498, 0.0
    %502 = vadd.xlane.f32.xlu0 %v501
    %v503 = vpop.xlane.xlu0 %502
    %v504 = vsel %vm247, %v500, 0.0
    %505 = vadd.xlane.f32.xlu0 %v504
    %v506 = vpop.xlane.xlu0 %505
    %v507 = vrcp.pop %v503
    %v508 = vrcp.pop %v506
    %v509 = vmul.f32 %v498, %v507
    %v510 = vmul.f32 %v500, %v508
    %v511 = vpack.c.bf16 %v510, %v509
    %512 = vrot.lane.b32.xlu0 %v193, 112
    %v513 = vpop.permute.xlu0 %512
    %v516 = vsel %vm247, %v511, 0
    %518 = vmatprep.subr.bf16.mxu0 0
    %519 = vmatpush1.bf16.msra.mxu0 0
    %520 = vmatprep.subr.bf16.mxu0 0
    %521 = vmatpush1.bf16.msra.mxu0 0
    %522 = vmatprep.subr.bf16.mxu0 0
    %523 = vmatpush1.bf16.msra.mxu0 0
    %524 = vmatprep.subr.bf16.mxu0 0
    %525 = vmatpush1.bf16.msra.mxu0 0
    %526 = vmatprep.subr.bf16.mxu0 0
    %527 = vmatpush1.bf16.msra.mxu0 0
    %528 = vmatprep.subr.bf16.mxu0 0
    %529 = vmatpush1.bf16.msra.mxu0 0
    %530 = vmatprep.subr.bf16.mxu0 0
    %531 = vmatpush1.bf16.msra.mxu0 0
    %532 = vmatprep.subr.bf16.mxu0 0
    %533 = vmatpush1.bf16.msra.mxu0 %v513
    %534 = vmatprep.subr.bf16.mxu0 0
    %535 = vmatpush2.bf16.msra.mxu0 0
    %536 = vmatprep.subr.bf16.mxu0 0
    %537 = vmatpush2.bf16.msra.mxu0 0
    %538 = vmatprep.subr.bf16.mxu0 0
    %539 = vmatpush2.bf16.msra.mxu0 0
    %540 = vmatprep.subr.bf16.mxu0 0
    %541 = vmatpush2.bf16.msra.mxu0 0
    %542 = vmatprep.subr.bf16.mxu0 0
    %543 = vmatpush2.bf16.msra.mxu0 0
    %544 = vmatprep.subr.bf16.mxu0 0
    %545 = vmatpush2.bf16.msra.mxu0 0
    %546 = vmatprep.subr.bf16.mxu0 0
    %547 = vmatpush2.bf16.msra.mxu0 0
    %548 = vmatprep.subr.bf16.mxu0 0
    %549 = vmatpush2.bf16.msra.mxu0 0
    %550 = vmatprep.mubr.bf16.mxu0 0
    %551 = vmatmul.mubr.bf16.gmra.mxu0 %v516
    %v552 = vpop.f32.mrf.mxu0
    %v553 = vadd.f32 0.0, %v552
    %v554 = vpop.f32.mrf.mxu0
    %v555 = vpop.f32.mrf.mxu0
    %v556 = vadd.f32 0.0, %v555
    %v557 = vpop.f32.mrf.mxu0
    %558 = vdwg.mxu0
    %559 = vrot.lane.b32.xlu0 %v163, 104
    %v560 = vpop.permute.xlu0 %559
    %561 = vrot.lane.b32.xlu0 %v192, 40
    %v562 = vpop.permute.xlu0 %561
    %v564 = vsel %vm199, %v560, 0
    %v567 = vsel %vm199, %v562, 0
    %569 = vmatprep.subr.bf16.mxu0 0
    %570 = vmatpush1.bf16.xpose.msra.mxu0 0
    %571 = vmatprep.subr.bf16.mxu0 0
    %572 = vmatpush1.bf16.xpose.msra.mxu0 0
    %573 = vmatprep.subr.bf16.mxu0 0
    %574 = vmatpush1.bf16.xpose.msra.mxu0 0
    %575 = vmatprep.subr.bf16.mxu0 0
    %576 = vmatpush1.bf16.xpose.msra.mxu0 0
    %577 = vmatprep.subr.bf16.mxu0 0
    %578 = vmatpush1.bf16.xpose.msra.mxu0 0
    %579 = vmatprep.subr.bf16.mxu0 0
    %580 = vmatpush1.bf16.xpose.msra.mxu0 0
    %581 = vmatprep.subr.bf16.mxu0 0
    %582 = vmatpush1.bf16.xpose.msra.mxu0 0
    %583 = vmatprep.subr.bf16.mxu0 0
    %584 = vmatpush1.bf16.xpose.msra.mxu0 %v567
    %585 = vmatprep.subr.bf16.mxu0 0
    %586 = vmatpush2.bf16.xpose.msra.mxu0 0
    %587 = vmatprep.subr.bf16.mxu0 0
    %588 = vmatpush2.bf16.xpose.msra.mxu0 0
    %589 = vmatprep.subr.bf16.mxu0 0
    %590 = vmatpush2.bf16.xpose.msra.mxu0 0
    %591 = vmatprep.subr.bf16.mxu0 0
    %592 = vmatpush2.bf16.xpose.msra.mxu0 0
    %593 = vmatprep.subr.bf16.mxu0 0
    %594 = vmatpush2.bf16.xpose.msra.mxu0 0
    %595 = vmatprep.subr.bf16.mxu0 0
    %596 = vmatpush2.bf16.xpose.msra.mxu0 0
    %597 = vmatprep.subr.bf16.mxu0 0
    %598 = vmatpush2.bf16.xpose.msra.mxu0 0
    %599 = vmatprep.subr.bf16.mxu0 0
    %600 = vmatpush2.bf16.xpose.msra.mxu0 0
    %601 = vmatprep.mubr.bf16.mxu0 0
    %602 = vmatmul.mubr.bf16.gmra.mxu0 %v564
    %v603 = vpop.f32.mrf.mxu0
    %v604 = vadd.f32 %v194, %v603
    %v605 = vpop.f32.mrf.mxu0
    %v606 = vpop.f32.mrf.mxu0
    %v607 = vadd.f32 %v195, %v606
    %v608 = vpop.f32.mrf.mxu0
    %609 = vdwg.mxu0
    %v610 = vsel %vm247, %v604, -inf
    %611 = vmax.xlane.f32.xlu0 %v610
    %v612 = vpop.xlane.xlu0 %611
    %v613 = vsel %vm247, %v607, -inf
    %614 = vmax.xlane.f32.xlu0 %v613
    %v615 = vpop.xlane.xlu0 %614
    %v616 = vsub.f32 %v604, %v612
    %v617 = vsub.f32 %v607, %v615
    %v618 = vmul.f32 %v616, 1.442695
    %v619 = vpow.pop %v618
    %v620 = vmul.f32 %v617, 1.442695
    %v621 = vpow.pop %v620
    %v622 = vsel %vm247, %v619, 0.0
    %623 = vadd.xlane.f32.xlu0 %v622
    %v624 = vpop.xlane.xlu0 %623
    %v625 = vsel %vm247, %v621, 0.0
    %626 = vadd.xlane.f32.xlu0 %v625
    %v627 = vpop.xlane.xlu0 %626
    %v628 = vrcp.pop %v624
    %v629 = vrcp.pop %v627
    %v630 = vmul.f32 %v619, %v628
    %v631 = vmul.f32 %v621, %v629
    %v632 = vpack.c.bf16 %v631, %v630
    %633 = vrot.lane.b32.xlu0 %v193, 104
    %v634 = vpop.permute.xlu0 %633
    %v637 = vsel %vm247, %v632, 0
    %639 = vmatprep.subr.bf16.mxu0 0
    %640 = vmatpush1.bf16.msra.mxu0 0
    %641 = vmatprep.subr.bf16.mxu0 0
    %642 = vmatpush1.bf16.msra.mxu0 0
    %643 = vmatprep.subr.bf16.mxu0 0
    %644 = vmatpush1.bf16.msra.mxu0 0
    %645 = vmatprep.subr.bf16.mxu0 0
    %646 = vmatpush1.bf16.msra.mxu0 0
    %647 = vmatprep.subr.bf16.mxu0 0
    %648 = vmatpush1.bf16.msra.mxu0 0
    %649 = vmatprep.subr.bf16.mxu0 0
    %650 = vmatpush1.bf16.msra.mxu0 0
    %651 = vmatprep.subr.bf16.mxu0 0
    %652 = vmatpush1.bf16.msra.mxu0 0
    %653 = vmatprep.subr.bf16.mxu0 0
    %654 = vmatpush1.bf16.msra.mxu0 %v634
    %655 = vmatprep.subr.bf16.mxu0 0
    %656 = vmatpush2.bf16.msra.mxu0 0
    %657 = vmatprep.subr.bf16.mxu0 0
    %658 = vmatpush2.bf16.msra.mxu0 0
    %659 = vmatprep.subr.bf16.mxu0 0
    %660 = vmatpush2.bf16.msra.mxu0 0
    %661 = vmatprep.subr.bf16.mxu0 0
    %662 = vmatpush2.bf16.msra.mxu0 0
    %663 = vmatprep.subr.bf16.mxu0 0
    %664 = vmatpush2.bf16.msra.mxu0 0
    %665 = vmatprep.subr.bf16.mxu0 0
    %666 = vmatpush2.bf16.msra.mxu0 0
    %667 = vmatprep.subr.bf16.mxu0 0
    %668 = vmatpush2.bf16.msra.mxu0 0
    %669 = vmatprep.subr.bf16.mxu0 0
    %670 = vmatpush2.bf16.msra.mxu0 0
    %671 = vmatprep.mubr.bf16.mxu0 0
    %672 = vmatmul.mubr.bf16.gmra.mxu0 %v637
    %v673 = vpop.f32.mrf.mxu0
    %v674 = vadd.f32 0.0, %v673
    %v675 = vpop.f32.mrf.mxu0
    %v676 = vpop.f32.mrf.mxu0
    %v677 = vadd.f32 0.0, %v676
    %v678 = vpop.f32.mrf.mxu0
    %679 = vdwg.mxu0
    %682 = vrot.lane.b32.xlu0 %v432, 8
    %v683 = vpop.permute.xlu0 %682
    %684 = vrot.lane.b32.xlu0 %v435, 8
    %v685 = vpop.permute.xlu0 %684
    %690 = vrot.lane.b32.xlu0 %v553, 16
    %v691 = vpop.permute.xlu0 %690
    %692 = vrot.lane.b32.xlu0 %v556, 16
    %v693 = vpop.permute.xlu0 %692
    %698 = vrot.lane.b32.xlu0 %v674, 24
    %v699 = vpop.permute.xlu0 %698
    %700 = vrot.lane.b32.xlu0 %v677, 24
    %v701 = vpop.permute.xlu0 %700
    %v704 = vsel %vm199, %v309, %v683
    %v705 = vsel %vm199, %v312, %v685
    %v706 = vsel %vm247, %v704, %v691
    %v707 = vsel %vm247, %v705, %v693
    %vm708 = vcmask 195584
    %v709 = vsel %vm708, %v706, %v699
    %v710 = vsel %vm708, %v707, %v701
    %v711 = vpack.c.bf16 %v710, %v709
    %v712 = vld [vmem:[%s6] sm:$0xf]
    %v713 = vld [vmem:[%s6 + $0x4] sm:$0xf]
    %v714 = vld [vmem:[%s6 + $0x8] sm:$0xf]
    %v715 = vld [vmem:[%s6 + $0xc] sm:$0xf]
    %v720 = vunpack.c.l.b16 %v712
    %v721 = vunpack.c.l.b16 %v713
    %v722 = vunpack.c.l.b16 %v714
    %v723 = vunpack.c.l.b16 %v715
    %v724 = vpack.c.b16 %v721, %v720
    %v725 = vpack.c.b16 %v723, %v722
    %v729 = vsel %vm42, %v711, 0
    %731 = vmatprep.subr.bf16.mxu0 0
    %732 = vmatpush1.bf16.msra.mxu0 0
    %733 = vmatprep.subr.bf16.mxu0 0
    %734 = vmatpush1.bf16.msra.mxu0 0
    %735 = vmatprep.subr.bf16.mxu0 0
    %736 = vmatpush1.bf16.msra.mxu0 0
    %737 = vmatprep.subr.bf16.mxu0 0
    %738 = vmatpush1.bf16.msra.mxu0 0
    %739 = vmatprep.subr.bf16.mxu0 0
    %740 = vmatpush1.bf16.msra.mxu0 0
    %741 = vmatprep.subr.bf16.mxu0 0
    %742 = vmatpush1.bf16.msra.mxu0 0
    %743 = vmatprep.subr.bf16.mxu0 0
    %744 = vmatpush1.bf16.msra.mxu0 %v725
    %745 = vmatprep.subr.bf16.mxu0 0
    %746 = vmatpush1.bf16.msra.mxu0 %v724
    %747 = vmatprep.subr.bf16.mxu0 0
    %748 = vmatpush2.bf16.msra.mxu0 0
    %749 = vmatprep.subr.bf16.mxu0 0
    %750 = vmatpush2.bf16.msra.mxu0 0
    %751 = vmatprep.subr.bf16.mxu0 0
    %752 = vmatpush2.bf16.msra.mxu0 0
    %753 = vmatprep.subr.bf16.mxu0 0
    %754 = vmatpush2.bf16.msra.mxu0 0
    %755 = vmatprep.subr.bf16.mxu0 0
    %756 = vmatpush2.bf16.msra.mxu0 0
    %757 = vmatprep.subr.bf16.mxu0 0
    %758 = vmatpush2.bf16.msra.mxu0 0
    %759 = vmatprep.subr.bf16.mxu0 0
    %760 = vmatpush2.bf16.msra.mxu0 0
    %761 = vmatprep.subr.bf16.mxu0 0
    %762 = vmatpush2.bf16.msra.mxu0 0
    %763 = vmatprep.mubr.bf16.mxu0 0
    %764 = vmatmul.mubr.bf16.gmra.mxu0 %v729
    %v765 = vpop.f32.mrf.mxu0
    %v766 = vadd.f32 0.0, %v765
    %v767 = vpop.f32.mrf.mxu0
    %v768 = vpop.f32.mrf.mxu0
    %v769 = vadd.f32 0.0, %v768
    %v770 = vpop.f32.mrf.mxu0
    %771 = vdwg.mxu0
    %v772 = vadd.f32 %v37, %v766
    %v773 = vadd.f32 %v38, %v769
    %v774 = vld [vmem:[%s7] sm:$0x1]
    %v775 = vmul.f32 %v772, %v772
    %v776 = vmul.f32 %v773, %v773
    %v777 = vsel %vm42, %v775, 0.0
    %778 = vadd.xlane.f32.xlu0 %v777
    %v779 = vpop.xlane.xlu0 %778
    %v780 = vsel %vm42, %v776, 0.0
    %781 = vadd.xlane.f32.xlu0 %v780
    %v782 = vpop.xlane.xlu0 %781
    %v783 = vmul.f32 %v779, %v49
    %v784 = vmul.f32 %v782, %v49
    %v785 = vadd.f32 %v783, 1e-06
    %v786 = vadd.f32 %v784, 1e-06
    %v787 = vrsqrt.pop %v785
    %v788 = vrsqrt.pop %v786
    %v789 = vmul.f32 %v772, %v787
    %v790 = vmul.f32 %v773, %v788
    %v792 = vlaneseq
    %v793 = vshrl.u32 %v792, 7
    %v794 = vsub.s32 0, %v793
    %v795 = vrot.slane %v774, %v794
    %v797 = vmul.f32 %v789, %v795
    %v798 = vmul.f32 %v790, %v795
    %v799 = vpack.c.bf16 %v798, %v797
    %v800 = vld [vmem:[%s8] sm:$0xf]
    %v801 = vld [vmem:[%s8 + $0x4] sm:$0xf]
    %v802 = vld [vmem:[%s8 + $0x8] sm:$0xf]
    %v803 = vld [vmem:[%s8 + $0xc] sm:$0xf]
    %v808 = vunpack.c.l.b16 %v800
    %v809 = vunpack.c.l.b16 %v801
    %v810 = vunpack.c.l.b16 %v802
    %v811 = vunpack.c.l.b16 %v803
    %v812 = vpack.c.b16 %v809, %v808
    %v813 = vpack.c.b16 %v811, %v810
    %v817 = vsel %vm42, %v799, 0
    %819 = vmatprep.subr.bf16.mxu0 0
    %820 = vmatpush1.bf16.msra.mxu0 0
    %821 = vmatprep.subr.bf16.mxu0 0
    %822 = vmatpush1.bf16.msra.mxu0 0
    %823 = vmatprep.subr.bf16.mxu0 0
    %824 = vmatpush1.bf16.msra.mxu0 0
    %825 = vmatprep.subr.bf16.mxu0 0
    %826 = vmatpush1.bf16.msra.mxu0 0
    %827 = vmatprep.subr.bf16.mxu0 0
    %828 = vmatpush1.bf16.msra.mxu0 0
    %829 = vmatprep.subr.bf16.mxu0 0
    %830 = vmatpush1.bf16.msra.mxu0 0
    %831 = vmatprep.subr.bf16.mxu0 0
    %832 = vmatpush1.bf16.msra.mxu0 %v813
    %833 = vmatprep.subr.bf16.mxu0 0
    %834 = vmatpush1.bf16.msra.mxu0 %v812
    %835 = vmatprep.subr.bf16.mxu0 0
    %836 = vmatpush2.bf16.msra.mxu0 0
    %837 = vmatprep.subr.bf16.mxu0 0
    %838 = vmatpush2.bf16.msra.mxu0 0
    %839 = vmatprep.subr.bf16.mxu0 0
    %840 = vmatpush2.bf16.msra.mxu0 0
    %841 = vmatprep.subr.bf16.mxu0 0
    %842 = vmatpush2.bf16.msra.mxu0 0
    %843 = vmatprep.subr.bf16.mxu0 0
    %844 = vmatpush2.bf16.msra.mxu0 0
    %845 = vmatprep.subr.bf16.mxu0 0
    %846 = vmatpush2.bf16.msra.mxu0 0
    %847 = vmatprep.subr.bf16.mxu0 0
    %848 = vmatpush2.bf16.msra.mxu0 0
    %849 = vmatprep.subr.bf16.mxu0 0
    %850 = vmatpush2.bf16.msra.mxu0 0
    %851 = vmatprep.mubr.bf16.mxu0 0
    %852 = vmatmul.mubr.bf16.gmra.mxu0 %v817
    %v853 = vpop.f32.mrf.mxu0
    %v854 = vadd.f32 0.0, %v853
    %v855 = vpop.f32.mrf.mxu0
    %v856 = vpop.f32.mrf.mxu0
    %v857 = vadd.f32 0.0, %v856
    %v858 = vpop.f32.mrf.mxu0
    %859 = vdwg.mxu0
    %v860 = vxor.u32 %v854, 2147483648
    %v861 = vxor.u32 %v857, 2147483648
    %v862 = vmul.f32 %v860, 1.442695
    %v863 = vpow.pop %v862
    %v864 = vmul.f32 %v861, 1.442695
    %v865 = vpow.pop %v864
    %v866 = vadd.f32 %v863, 1.0
    %v867 = vadd.f32 %v865, 1.0
    %v868 = vrcp.pop %v866
    %v869 = vmul.f32 1.0, %v868
    %v870 = vrcp.pop %v867
    %v871 = vmul.f32 1.0, %v870
    %v872 = vmul.f32 %v854, %v869
    %v873 = vmul.f32 %v857, %v871
    %876 = vrot.lane.b32.xlu0 %v854, 64
    %v877 = vpop.permute.xlu0 %876
    %878 = vrot.lane.b32.xlu0 %v857, 64
    %v879 = vpop.permute.xlu0 %878
    %v882 = vmul.f32 %v872, %v877
    %v883 = vmul.f32 %v873, %v879
    %v884 = vpack.c.bf16 %v883, %v882
    %v885 = vld [vmem:[%s9] sm:$0xf]
    %v886 = vld [vmem:[%s9 + $0x4] sm:$0xf]
    %v887 = vld [vmem:[%s9 + $0x8] sm:$0xf]
    %v888 = vld [vmem:[%s9 + $0xc] sm:$0xf]
    %v889 = vld [vmem:[%s9 + $0x10] sm:$0xf]
    %v890 = vld [vmem:[%s9 + $0x14] sm:$0xf]
    %v891 = vld [vmem:[%s9 + $0x18] sm:$0xf]
    %v892 = vld [vmem:[%s9 + $0x1c] sm:$0xf]
    %v901 = vunpack.c.l.b16 %v885
    %v902 = vunpack.c.l.b16 %v886
    %v903 = vunpack.c.l.b16 %v887
    %v904 = vunpack.c.l.b16 %v888
    %v905 = vunpack.c.l.b16 %v889
    %v906 = vunpack.c.l.b16 %v890
    %v907 = vunpack.c.l.b16 %v891
    %v908 = vunpack.c.l.b16 %v892
    %v909 = vpack.c.b16 %v902, %v901
    %v910 = vpack.c.b16 %v904, %v903
    %v911 = vpack.c.b16 %v906, %v905
    %v912 = vpack.c.b16 %v908, %v907
    %vm917 = vcmask 523264
    %v919 = vsel %vm917, %v884, 0
    %921 = vmatprep.subr.bf16.mxu0 0
    %922 = vmatpush1.bf16.msra.mxu0 0
    %923 = vmatprep.subr.bf16.mxu0 0
    %924 = vmatpush1.bf16.msra.mxu0 0
    %925 = vmatprep.subr.bf16.mxu0 0
    %926 = vmatpush1.bf16.msra.mxu0 0
    %927 = vmatprep.subr.bf16.mxu0 0
    %928 = vmatpush1.bf16.msra.mxu0 0
    %929 = vmatprep.subr.bf16.mxu0 0
    %930 = vmatpush1.bf16.msra.mxu0 %v912
    %931 = vmatprep.subr.bf16.mxu0 0
    %932 = vmatpush1.bf16.msra.mxu0 %v911
    %933 = vmatprep.subr.bf16.mxu0 0
    %934 = vmatpush1.bf16.msra.mxu0 %v910
    %935 = vmatprep.subr.bf16.mxu0 0
    %936 = vmatpush1.bf16.msra.mxu0 %v909
    %937 = vmatprep.subr.bf16.mxu0 0
    %938 = vmatpush2.bf16.msra.mxu0 0
    %939 = vmatprep.subr.bf16.mxu0 0
    %940 = vmatpush2.bf16.msra.mxu0 0
    %941 = vmatprep.subr.bf16.mxu0 0
    %942 = vmatpush2.bf16.msra.mxu0 0
    %943 = vmatprep.subr.bf16.mxu0 0
    %944 = vmatpush2.bf16.msra.mxu0 0
    %945 = vmatprep.subr.bf16.mxu0 0
    %946 = vmatpush2.bf16.msra.mxu0 0
    %947 = vmatprep.subr.bf16.mxu0 0
    %948 = vmatpush2.bf16.msra.mxu0 0
    %949 = vmatprep.subr.bf16.mxu0 0
    %950 = vmatpush2.bf16.msra.mxu0 0
    %951 = vmatprep.subr.bf16.mxu0 0
    %952 = vmatpush2.bf16.msra.mxu0 0
    %953 = vmatprep.mubr.bf16.mxu0 0
    %954 = vmatmul.mubr.bf16.gmra.mxu0 %v919
    %v955 = vpop.f32.mrf.mxu0
    %v956 = vadd.f32 0.0, %v955
    %v957 = vpop.f32.mrf.mxu0
    %v958 = vpop.f32.mrf.mxu0
    %v959 = vadd.f32 0.0, %v958
    %v960 = vpop.f32.mrf.mxu0
    %961 = vdwg.mxu0
    %v962 = vadd.f32 %v772, %v956
    %v963 = vadd.f32 %v773, %v959
    %964 = vst.msk [vmem:[#allocation2] sm:$0xff] %vm42, %v962
    %965 = vst.msk [vmem:[#allocation2 + $0x8] sm:$0xff] %vm42, %v963
    // Predicated region
    $region42: #{transformer_block.1} parent=1 // pred_check
      _
    $region43: #{transformer_block.1} parent=1 // pred_check_branch
      %967 = sbr.rel (0) target = $region45
    $region44: #{transformer_block.1} parent=1 // pred_region
      %s969 = ssub.s32 256, 256
      %970 = vsyncadd [#allocation3], %s969
      %s971 = sshll.u32 [#allocation2], 4
      %s972 = int_to_ptr.vmem [resolvable:$true] %s971
      %977 = dma.vmem_to_hbm [thread:$0]  %s972, 256, %s10, [#allocation3], 128, 128, 8
    $region45: #{transformer_block.1} parent=1 // pred_fallthru
      _
    // Predicated region
    $region46: #{transformer_block.1} parent=1 // pred_check
      _
    $region47: #{transformer_block.1} parent=1 // pred_check_branch
      %979 = sbr.rel (0) target = $region49
    $region48: #{transformer_block.1} parent=1 // pred_region
      %980 = dma.done [#allocation3], 256
    $region49: #{transformer_block.1} parent=1 // pred_fallthru
      _
    %981 = vsyncpa [#allocation3], 1

</llo_original>
